<compile_context>
chip_gen: v5e
topology: v5e:2x2
jax: 0.10.0
libtpu: 0.0.40
codegen_flags: <defaults>
</compile_context>

<pallas_src>
import jax
import jax.numpy as jnp
from jax.experimental import pallas as pl
from jax.experimental.pallas import tpu as pltpu

H = 32  # hidden size (fixed by the module: nn.GRU(feature_size, 32, 2))


def gru_kernel(gi0_ref, hinit_ref, whh0_ref, bhh0n_ref,
               w1f_ref, b1rz_ref, bih1n_ref, bhh1n_ref,
               hseq_ref, hout_ref,
               h_scratch):
    c = pl.program_id(0)

    # Initialize the carried hidden state from the provided h at the first chunk.
    @pl.when(c == 0)
    def _():
        h_scratch[...] = hinit_ref[...]

    # Loop-invariant weights/biases, loaded once per chunk.
    whh0 = whh0_ref[...]
    bhh0n = bhh0n_ref[...]
    w1f = w1f_ref[...]
    b1rz = b1rz_ref[...]
    bih1n = bih1n_ref[...]
    bhh1n = bhh1n_ref[...]

    tc = hseq_ref.shape[0]  # time steps in this chunk (static)

    def step(t, carry):
        h0, h1 = carry

        # ---- layer 0: input projection precomputed (includes its biases) ----
        gi0 = gi0_ref[t]                                              # (B, 3H)
        gh0 = jnp.dot(h0, whh0, preferred_element_type=jnp.float32)   # (B, 3H)
        rz0 = jax.nn.sigmoid(gi0[:, :2 * H] + gh0[:, :2 * H])
        r0, z0 = rz0[:, :H], rz0[:, H:]
        n0 = jnp.tanh(gi0[:, 2 * H:] + r0 * (gh0[:, 2 * H:] + bhh0n))
        h0n = (1.0 - z0) * n0 + z0 * h0

        # ---- layer 1: gi/gh fused into a single (B, 2H) x (2H, 4H) matmul ----
        #   g1[:, :2H]   = gi_rz + gh_rz
        #   g1[:, 2H:3H] = gi_n
        #   g1[:, 3H:]   = gh_n
        cat = jnp.concatenate([h0n, h1], axis=1)                      # (B, 2H)
        g1 = jnp.dot(cat, w1f, preferred_element_type=jnp.float32)    # (B, 4H)
        rz1 = jax.nn.sigmoid(g1[:, :2 * H] + b1rz)
        r1, z1 = rz1[:, :H], rz1[:, H:]
        n1 = jnp.tanh(g1[:, 2 * H:3 * H] + bih1n
                      + r1 * (g1[:, 3 * H:] + bhh1n))
        h1n = (1.0 - z1) * n1 + z1 * h1

        hseq_ref[t] = h1n
        return (h0n, h1n)

    unroll = True if tc <= 16 else 8
    h0f, h1f = jax.lax.fori_loop(0, tc, step,
                                 (h_scratch[0], h_scratch[1]),
                                 unroll=unroll)

    # Carry hidden state to the next chunk and emit the final hidden state.
    h_scratch[0] = h0f
    h_scratch[1] = h1f
    hout_ref[0] = h0f
    hout_ref[1] = h1f


def _pick_time_chunk(T, max_chunk=128):
    tc = min(T, max_chunk)
    while T % tc:
        tc -= 1
    return tc


def gru_forward(x, h, params):
    """x: (B, T, F) float32, h: (2, B, 32) float32."""
    B, T, F = x.shape
    (wih0, whh0, bih0, bhh0, wih1, whh1, bih1, bhh1, wlin, blin) = params

    x_tm = jnp.transpose(x, (1, 0, 2))                     # time-major (T, B, F)

    # r/z biases are always summed -> pre-sum; keep n-gate biases separate.
    b0_pre = jnp.concatenate(
        [bih0[:, :2 * H] + bhh0[:, :2 * H], bih0[:, 2 * H:]], axis=1)  # (1, 3H)
    bhh0_n = bhh0[:, 2 * H:]                               # (1, H)
    b1_rz = bih1[:, :2 * H] + bhh1[:, :2 * H]              # (1, 2H)
    bih1_n = bih1[:, 2 * H:]                               # (1, H)
    bhh1_n = bhh1[:, 2 * H:]                               # (1, H)

    # Hoisted layer-0 input projection for all time steps (one dense matmul).
    gi0_all = jnp.einsum('tbf,fg->tbg', x_tm, wih0) + b0_pre          # (T, B, 3H)

    # Fused layer-1 weight (2H, 4H) == (64, 128):
    #   cols [0,2H)  : [W_ih1_rz ; W_hh1_rz]  -> gi_rz + gh_rz (summed)
    #   cols [2H,3H) : [W_ih1_n  ; 0       ]  -> gi_n
    #   cols [3H,4H) : [0        ; W_hh1_n ]  -> gh_n
    zhh = jnp.zeros((H, H), jnp.float32)
    w1f = jnp.concatenate([
        jnp.concatenate([wih1[:, :2 * H], wih1[:, 2 * H:], zhh], axis=1),
        jnp.concatenate([whh1[:, :2 * H], zhh, whh1[:, 2 * H:]], axis=1),
    ], axis=0)                                             # (2H, 4H)

    TC = _pick_time_chunk(T)
    grid = (T // TC,)

    grid_spec = pltpu.PrefetchScalarGridSpec(
        num_scalar_prefetch=0,
        grid=grid,
        in_specs=[
            pl.BlockSpec((TC, B, 3 * H), lambda c: (c, 0, 0)),   # gi0 chunk
            pl.BlockSpec((2, B, H), lambda c: (0, 0, 0)),        # h init
            pl.BlockSpec((H, 3 * H), lambda c: (0, 0)),          # W_hh_l0^T
            pl.BlockSpec((1, H), lambda c: (0, 0)),              # b_hh_l0 (n gate)
            pl.BlockSpec((2 * H, 4 * H), lambda c: (0, 0)),      # fused layer-1 W
            pl.BlockSpec((1, 2 * H), lambda c: (0, 0)),          # layer-1 r/z bias
            pl.BlockSpec((1, H), lambda c: (0, 0)),              # b_ih_l1 (n gate)
            pl.BlockSpec((1, H), lambda c: (0, 0)),              # b_hh_l1 (n gate)
        ],
        out_specs=[
            pl.BlockSpec((TC, B, H), lambda c: (c, 0, 0)),       # layer-1 hidden seq
            pl.BlockSpec((2, B, H), lambda c: (0, 0, 0)),        # final hidden
        ],
        scratch_shapes=[pltpu.VMEM((2, B, H), jnp.float32)],
    )

    hseq, h_out = pl.pallas_call(
        gru_kernel,
        grid_spec=grid_spec,
        out_shape=(jax.ShapeDtypeStruct((T, B, H), jnp.float32),
                   jax.ShapeDtypeStruct((2, B, H), jnp.float32)),
        compiler_params=pltpu.CompilerParams(
            dimension_semantics=("arbitrary",)),
    )(gi0_all, h, whh0, bhh0_n, w1f, b1_rz, bih1_n, bhh1_n)

    # Final Linear(32 -> 1), one dense matmul on the lane-dense hidden sequence.
    y_tm = jnp.einsum('tbh,ho->tbo', hseq, wlin) + blin    # (T, B, 1)
    y = jnp.transpose(y_tm, (1, 0, 2))                     # back to (B, T, 1)
    return y, h_out


def init_params(key, feature_size):
    """Deterministic init matching PyTorch shapes (weights stored pre-transposed)."""
    k = 1.0 / jnp.sqrt(jnp.float32(H))
    keys = jax.random.split(key, 10)

    def u(kk, shape):
        return jax.random.uniform(kk, shape, jnp.float32, -k, k)

    # PyTorch: weight_ih_l0 (3H, F), weight_hh_l0 (3H, H), biases (3H,); layer 1
    # takes H-dim input; linear: (1, H) weight, (1,) bias.  We store transposes.
    wih0 = u(keys[0], (feature_size, 3 * H))
    whh0 = u(keys[1], (H, 3 * H))
    bih0 = u(keys[2], (1, 3 * H))
    bhh0 = u(keys[3], (1, 3 * H))
    wih1 = u(keys[4], (H, 3 * H))
    whh1 = u(keys[5], (H, 3 * H))
    bih1 = u(keys[6], (1, 3 * H))
    bhh1 = u(keys[7], (1, 3 * H))
    wlin = u(keys[8], (H, 1))
    blin = u(keys[9], (1, 1))
    return (wih0, whh0, bih0, bhh0, wih1, whh1, bih1, bhh1, wlin, blin)


def gru_ref(x, h, params):
    """Pure-JAX reference of the PyTorch forward for verification."""
    (wih0, whh0, bih0, bhh0, wih1, whh1, bih1, bhh1, wlin, blin) = params

    def cell(inp, hp, wih, whh, bih, bhh):
        gi = inp @ wih + bih
        gh = hp @ whh + bhh
        r = jax.nn.sigmoid(gi[:, :H] + gh[:, :H])
        z = jax.nn.sigmoid(gi[:, H:2 * H] + gh[:, H:2 * H])
        n = jnp.tanh(gi[:, 2 * H:] + r * gh[:, 2 * H:])
        return (1.0 - z) * n + z * hp

    h0, h1 = h[0], h[1]
    ys = []
    for t in range(x.shape[1]):
        h0 = cell(x[:, t], h0, wih0, whh0, bih0, bhh0)
        h1 = cell(h0, h1, wih1, whh1, bih1, bhh1)
        ys.append(h1 @ wlin + blin)
    return jnp.stack(ys, axis=1), jnp.stack([h0, h1])


if __name__ == "__main__":
    feature_size = 4
    B, T = 2, 8

    key = jax.random.PRNGKey(0)
    kx, kh, kp = jax.random.split(key, 3)
    x = jax.random.normal(kx, (B, T, feature_size), jnp.float32)
    h = jax.random.normal(kh, (2, B, H), jnp.float32)
    params = init_params(kp, feature_size)

    fwd = jax.jit(gru_forward)
    y, h_out = fwd(x, h, params)
    y = jax.block_until_ready(y)
    h_out = jax.block_until_ready(h_out)

    y_ref, h_ref = gru_ref(x, h, params)
    assert y.shape == (B, T, 1) and h_out.shape == (2, B, H)
    assert jnp.allclose(y, y_ref, atol=1e-5, rtol=1e-5)
    assert jnp.allclose(h_out, h_ref, atol=1e-5, rtol=1e-5)

    print("KERNEL_OK")
</pallas_src>

<mosaic_0001>
module attributes {stable_mosaic.version = 11 : i64} {
  func.func @gru_kernel(%arg0: i32, %arg1: memref<8x2x96xf32, #tpu.memory_space<vmem>>, %arg2: memref<2x2x32xf32, #tpu.memory_space<vmem>>, %arg3: memref<32x96xf32, #tpu.memory_space<vmem>>, %arg4: memref<1x32xf32, #tpu.memory_space<vmem>>, %arg5: memref<64x128xf32, #tpu.memory_space<vmem>>, %arg6: memref<1x64xf32, #tpu.memory_space<vmem>>, %arg7: memref<1x32xf32, #tpu.memory_space<vmem>>, %arg8: memref<1x32xf32, #tpu.memory_space<vmem>>, %arg9: memref<8x2x32xf32, #tpu.memory_space<vmem>>, %arg10: memref<2x2x32xf32, #tpu.memory_space<vmem>>, %arg11: memref<2x2x32xf32, #tpu.memory_space<vmem>>) attributes {dimension_semantics = [#tpu.dimension_semantics<arbitrary>], iteration_bounds = array<i64: 1>, scalar_prefetch = 0 : i64, scratch_operands = 1 : i64, tpu.core_type = #tpu.core_type<tc>, window_params = [{transform_indices = @transform_0, window_bounds = array<i64: 8, 2, 96>}, {pipeline_mode = #tpu.pipeline_mode<synchronous>, transform_indices = @transform_1, window_bounds = array<i64: 2, 2, 32>}, {pipeline_mode = #tpu.pipeline_mode<synchronous>, transform_indices = @transform_2, window_bounds = array<i64: 32, 96>}, {pipeline_mode = #tpu.pipeline_mode<synchronous>, transform_indices = @transform_3, window_bounds = array<i64: 1, 32>}, {pipeline_mode = #tpu.pipeline_mode<synchronous>, transform_indices = @transform_4, window_bounds = array<i64: 64, 128>}, {pipeline_mode = #tpu.pipeline_mode<synchronous>, transform_indices = @transform_5, window_bounds = array<i64: 1, 64>}, {pipeline_mode = #tpu.pipeline_mode<synchronous>, transform_indices = @transform_6, window_bounds = array<i64: 1, 32>}, {pipeline_mode = #tpu.pipeline_mode<synchronous>, transform_indices = @transform_7, window_bounds = array<i64: 1, 32>}, {transform_indices = @transform_8, window_bounds = array<i64: 8, 2, 32>}, {pipeline_mode = #tpu.pipeline_mode<synchronous>, transform_indices = @transform_9, window_bounds = array<i64: 2, 2, 32>}]} {
    %c0_i32 = arith.constant 0 : i32
    %0 = arith.cmpi eq, %arg0, %c0_i32 : i32
    %1 = arith.extui %0 : i1 to i32
    %c0_i32_0 = arith.constant 0 : i32
    %2 = arith.cmpi ne, %1, %c0_i32_0 : i32
    scf.if %2 {
      %c0_109 = arith.constant 0 : index
      %c0_110 = arith.constant 0 : index
      %c0_111 = arith.constant 0 : index
      %473 = vector.load %arg2[%c0_109, %c0_110, %c0_111] : memref<2x2x32xf32, #tpu.memory_space<vmem>>, vector<2x2x32xf32>
      %c0_112 = arith.constant 0 : index
      %c0_113 = arith.constant 0 : index
      %c0_114 = arith.constant 0 : index
      %474 = vector.load %arg11[%c0_112, %c0_113, %c0_114] : memref<2x2x32xf32, #tpu.memory_space<vmem>>, vector<2x2x32xf32>
      tpu.vector_store %arg11[%c0_112, %c0_113, %c0_114], %473 {strides = array<i32>} : memref<2x2x32xf32, #tpu.memory_space<vmem>>, vector<2x2x32xf32>,
    } else {
    }
    %c0 = arith.constant 0 : index
    %c0_1 = arith.constant 0 : index
    %3 = vector.load %arg3[%c0, %c0_1] : memref<32x96xf32, #tpu.memory_space<vmem>>, vector<32x96xf32>
    %c0_2 = arith.constant 0 : index
    %c0_3 = arith.constant 0 : index
    %4 = vector.load %arg4[%c0_2, %c0_3] : memref<1x32xf32, #tpu.memory_space<vmem>>, vector<1x32xf32>
    %c0_4 = arith.constant 0 : index
    %c0_5 = arith.constant 0 : index
    %5 = vector.load %arg5[%c0_4, %c0_5] : memref<64x128xf32, #tpu.memory_space<vmem>>, vector<64x128xf32>
    %c0_6 = arith.constant 0 : index
    %c0_7 = arith.constant 0 : index
    %6 = vector.load %arg6[%c0_6, %c0_7] : memref<1x64xf32, #tpu.memory_space<vmem>>, vector<1x64xf32>
    %c0_8 = arith.constant 0 : index
    %c0_9 = arith.constant 0 : index
    %7 = vector.load %arg7[%c0_8, %c0_9] : memref<1x32xf32, #tpu.memory_space<vmem>>, vector<1x32xf32>
    %c0_10 = arith.constant 0 : index
    %c0_11 = arith.constant 0 : index
    %8 = vector.load %arg8[%c0_10, %c0_11] : memref<1x32xf32, #tpu.memory_space<vmem>>, vector<1x32xf32>
    %c0_12 = arith.constant 0 : index
    %c0_13 = arith.constant 0 : index
    %c0_14 = arith.constant 0 : index
    %9 = vector.load %arg11[%c0_12, %c0_13, %c0_14] : memref<2x2x32xf32, #tpu.memory_space<vmem>>, vector<1x2x32xf32>
    %10 = vector.shape_cast %9 : vector<1x2x32xf32> to vector<2x32xf32>
    %c1 = arith.constant 1 : index
    %c0_15 = arith.constant 0 : index
    %c0_16 = arith.constant 0 : index
    %11 = vector.load %arg11[%c1, %c0_15, %c0_16] : memref<2x2x32xf32, #tpu.memory_space<vmem>>, vector<1x2x32xf32>
    %12 = vector.shape_cast %11 : vector<1x2x32xf32> to vector<2x32xf32>
    %c0_i32_17 = arith.constant 0 : i32
    %13 = arith.index_cast %c0_i32_17 : i32 to index
    %c0_18 = arith.constant 0 : index
    %c0_19 = arith.constant 0 : index
    %14 = vector.load %arg1[%13, %c0_18, %c0_19] : memref<8x2x96xf32, #tpu.memory_space<vmem>>, vector<1x2x96xf32>
    %15 = vector.shape_cast %14 : vector<1x2x96xf32> to vector<2x96xf32>
    %cst = arith.constant dense<0.000000e+00> : vector<2x96xf32>
    %16 = tpu.matmul %10, %3, %cst {dimension_numbers = #tpu.dot_dimension_numbers<[1], [0], [0], [1], [0, 0, 1, 1], [], []>} : vector<2x32xf32>, vector<32x96xf32>, vector<2x96xf32> -> vector<2x96xf32>
    %17 = vector.extract_strided_slice %15 {offsets = [0, 0], sizes = [2, 64], strides = [1, 1]} : vector<2x96xf32> to vector<2x64xf32>
    %18 = vector.extract_strided_slice %16 {offsets = [0, 0], sizes = [2, 64], strides = [1, 1]} : vector<2x96xf32> to vector<2x64xf32>
    %19 = arith.addf %17, %18 : vector<2x64xf32>
    %20 = arith.negf %19 : vector<2x64xf32>
    %21 = math.exp %20 : vector<2x64xf32>
    %cst_20 = arith.constant 1.000000e+00 : f32
    %22 = vector.broadcast %cst_20 : f32 to vector<2x64xf32>
    %23 = arith.addf %22, %21 : vector<2x64xf32>
    %24 = arith.divf %22, %23 : vector<2x64xf32>
    %25 = vector.extract_strided_slice %24 {offsets = [0, 0], sizes = [2, 32], strides = [1, 1]} : vector<2x64xf32> to vector<2x32xf32>
    %26 = vector.extract_strided_slice %24 {offsets = [0, 32], sizes = [2, 32], strides = [1, 1]} : vector<2x64xf32> to vector<2x32xf32>
    %27 = vector.extract_strided_slice %15 {offsets = [0, 64], sizes = [2, 32], strides = [1, 1]} : vector<2x96xf32> to vector<2x32xf32>
    %28 = vector.extract_strided_slice %16 {offsets = [0, 64], sizes = [2, 32], strides = [1, 1]} : vector<2x96xf32> to vector<2x32xf32>
    %29 = vector.broadcast %4 : vector<1x32xf32> to vector<2x32xf32>
    %30 = arith.addf %28, %29 : vector<2x32xf32>
    %31 = arith.mulf %25, %30 : vector<2x32xf32>
    %32 = arith.addf %27, %31 : vector<2x32xf32>
    %33 = math.tanh %32 : vector<2x32xf32>
    %cst_21 = arith.constant 1.000000e+00 : f32
    %34 = vector.broadcast %cst_21 : f32 to vector<2x32xf32>
    %35 = arith.subf %34, %26 : vector<2x32xf32>
    %36 = arith.mulf %35, %33 : vector<2x32xf32>
    %37 = arith.mulf %26, %10 : vector<2x32xf32>
    %38 = arith.addf %36, %37 : vector<2x32xf32>
    %39 = tpu.concatenate %38, %12 in 1 : vector<2x32xf32>, vector<2x32xf32> -> vector<2x64xf32>
    %cst_22 = arith.constant dense<0.000000e+00> : vector<2x128xf32>
    %40 = tpu.matmul %39, %5, %cst_22 {dimension_numbers = #tpu.dot_dimension_numbers<[1], [0], [0], [1], [0, 0, 1, 1], [], []>} : vector<2x64xf32>, vector<64x128xf32>, vector<2x128xf32> -> vector<2x128xf32>
    %41 = vector.extract_strided_slice %40 {offsets = [0, 0], sizes = [2, 64], strides = [1, 1]} : vector<2x128xf32> to vector<2x64xf32>
    %42 = vector.broadcast %6 : vector<1x64xf32> to vector<2x64xf32>
    %43 = arith.addf %41, %42 : vector<2x64xf32>
    %44 = arith.negf %43 : vector<2x64xf32>
    %45 = math.exp %44 : vector<2x64xf32>
    %cst_23 = arith.constant 1.000000e+00 : f32
    %46 = vector.broadcast %cst_23 : f32 to vector<2x64xf32>
    %47 = arith.addf %46, %45 : vector<2x64xf32>
    %48 = arith.divf %46, %47 : vector<2x64xf32>
    %49 = vector.extract_strided_slice %48 {offsets = [0, 0], sizes = [2, 32], strides = [1, 1]} : vector<2x64xf32> to vector<2x32xf32>
    %50 = vector.extract_strided_slice %48 {offsets = [0, 32], sizes = [2, 32], strides = [1, 1]} : vector<2x64xf32> to vector<2x32xf32>
    %51 = vector.extract_strided_slice %40 {offsets = [0, 64], sizes = [2, 32], strides = [1, 1]} : vector<2x128xf32> to vector<2x32xf32>
    %52 = vector.broadcast %7 : vector<1x32xf32> to vector<2x32xf32>
    %53 = arith.addf %51, %52 : vector<2x32xf32>
    %54 = vector.extract_strided_slice %40 {offsets = [0, 96], sizes = [2, 32], strides = [1, 1]} : vector<2x128xf32> to vector<2x32xf32>
    %55 = vector.broadcast %8 : vector<1x32xf32> to vector<2x32xf32>
    %56 = arith.addf %54, %55 : vector<2x32xf32>
    %57 = arith.mulf %49, %56 : vector<2x32xf32>
    %58 = arith.addf %53, %57 : vector<2x32xf32>
    %59 = math.tanh %58 : vector<2x32xf32>
    %cst_24 = arith.constant 1.000000e+00 : f32
    %60 = vector.broadcast %cst_24 : f32 to vector<2x32xf32>
    %61 = arith.subf %60, %50 : vector<2x32xf32>
    %62 = arith.mulf %61, %59 : vector<2x32xf32>
    %63 = arith.mulf %50, %12 : vector<2x32xf32>
    %64 = arith.addf %62, %63 : vector<2x32xf32>
    %65 = arith.index_cast %c0_i32_17 : i32 to index
    %c0_25 = arith.constant 0 : index
    %c0_26 = arith.constant 0 : index
    %66 = vector.load %arg9[%65, %c0_25, %c0_26] : memref<8x2x32xf32, #tpu.memory_space<vmem>>, vector<1x2x32xf32>
    %67 = vector.shape_cast %66 : vector<1x2x32xf32> to vector<2x32xf32>
    %68 = vector.shape_cast %64 : vector<2x32xf32> to vector<1x2x32xf32>
    tpu.vector_store %arg9[%65, %c0_25, %c0_26], %68 {strides = array<i32>} : memref<8x2x32xf32, #tpu.memory_space<vmem>>, vector<1x2x32xf32>,
    %c1_i32 = arith.constant 1 : i32
    %69 = arith.index_cast %c1_i32 : i32 to index
    %c0_27 = arith.constant 0 : index
    %c0_28 = arith.constant 0 : index
    %70 = vector.load %arg1[%69, %c0_27, %c0_28] : memref<8x2x96xf32, #tpu.memory_space<vmem>>, vector<1x2x96xf32>
    %71 = vector.shape_cast %70 : vector<1x2x96xf32> to vector<2x96xf32>
    %cst_29 = arith.constant dense<0.000000e+00> : vector<2x96xf32>
    %72 = tpu.matmul %38, %3, %cst_29 {dimension_numbers = #tpu.dot_dimension_numbers<[1], [0], [0], [1], [0, 0, 1, 1], [], []>} : vector<2x32xf32>, vector<32x96xf32>, vector<2x96xf32> -> vector<2x96xf32>
    %73 = vector.extract_strided_slice %71 {offsets = [0, 0], sizes = [2, 64], strides = [1, 1]} : vector<2x96xf32> to vector<2x64xf32>
    %74 = vector.extract_strided_slice %72 {offsets = [0, 0], sizes = [2, 64], strides = [1, 1]} : vector<2x96xf32> to vector<2x64xf32>
    %75 = arith.addf %73, %74 : vector<2x64xf32>
    %76 = arith.negf %75 : vector<2x64xf32>
    %77 = math.exp %76 : vector<2x64xf32>
    %cst_30 = arith.constant 1.000000e+00 : f32
    %78 = vector.broadcast %cst_30 : f32 to vector<2x64xf32>
    %79 = arith.addf %78, %77 : vector<2x64xf32>
    %80 = arith.divf %78, %79 : vector<2x64xf32>
    %81 = vector.extract_strided_slice %80 {offsets = [0, 0], sizes = [2, 32], strides = [1, 1]} : vector<2x64xf32> to vector<2x32xf32>
    %82 = vector.extract_strided_slice %80 {offsets = [0, 32], sizes = [2, 32], strides = [1, 1]} : vector<2x64xf32> to vector<2x32xf32>
    %83 = vector.extract_strided_slice %71 {offsets = [0, 64], sizes = [2, 32], strides = [1, 1]} : vector<2x96xf32> to vector<2x32xf32>
    %84 = vector.extract_strided_slice %72 {offsets = [0, 64], sizes = [2, 32], strides = [1, 1]} : vector<2x96xf32> to vector<2x32xf32>
    %85 = vector.broadcast %4 : vector<1x32xf32> to vector<2x32xf32>
    %86 = arith.addf %84, %85 : vector<2x32xf32>
    %87 = arith.mulf %81, %86 : vector<2x32xf32>
    %88 = arith.addf %83, %87 : vector<2x32xf32>
    %89 = math.tanh %88 : vector<2x32xf32>
    %cst_31 = arith.constant 1.000000e+00 : f32
    %90 = vector.broadcast %cst_31 : f32 to vector<2x32xf32>
    %91 = arith.subf %90, %82 : vector<2x32xf32>
    %92 = arith.mulf %91, %89 : vector<2x32xf32>
    %93 = arith.mulf %82, %38 : vector<2x32xf32>
    %94 = arith.addf %92, %93 : vector<2x32xf32>
    %95 = tpu.concatenate %94, %64 in 1 : vector<2x32xf32>, vector<2x32xf32> -> vector<2x64xf32>
    %cst_32 = arith.constant dense<0.000000e+00> : vector<2x128xf32>
    %96 = tpu.matmul %95, %5, %cst_32 {dimension_numbers = #tpu.dot_dimension_numbers<[1], [0], [0], [1], [0, 0, 1, 1], [], []>} : vector<2x64xf32>, vector<64x128xf32>, vector<2x128xf32> -> vector<2x128xf32>
    %97 = vector.extract_strided_slice %96 {offsets = [0, 0], sizes = [2, 64], strides = [1, 1]} : vector<2x128xf32> to vector<2x64xf32>
    %98 = vector.broadcast %6 : vector<1x64xf32> to vector<2x64xf32>
    %99 = arith.addf %97, %98 : vector<2x64xf32>
    %100 = arith.negf %99 : vector<2x64xf32>
    %101 = math.exp %100 : vector<2x64xf32>
    %cst_33 = arith.constant 1.000000e+00 : f32
    %102 = vector.broadcast %cst_33 : f32 to vector<2x64xf32>
    %103 = arith.addf %102, %101 : vector<2x64xf32>
    %104 = arith.divf %102, %103 : vector<2x64xf32>
    %105 = vector.extract_strided_slice %104 {offsets = [0, 0], sizes = [2, 32], strides = [1, 1]} : vector<2x64xf32> to vector<2x32xf32>
    %106 = vector.extract_strided_slice %104 {offsets = [0, 32], sizes = [2, 32], strides = [1, 1]} : vector<2x64xf32> to vector<2x32xf32>
    %107 = vector.extract_strided_slice %96 {offsets = [0, 64], sizes = [2, 32], strides = [1, 1]} : vector<2x128xf32> to vector<2x32xf32>
    %108 = vector.broadcast %7 : vector<1x32xf32> to vector<2x32xf32>
    %109 = arith.addf %107, %108 : vector<2x32xf32>
    %110 = vector.extract_strided_slice %96 {offsets = [0, 96], sizes = [2, 32], strides = [1, 1]} : vector<2x128xf32> to vector<2x32xf32>
    %111 = vector.broadcast %8 : vector<1x32xf32> to vector<2x32xf32>
    %112 = arith.addf %110, %111 : vector<2x32xf32>
    %113 = arith.mulf %105, %112 : vector<2x32xf32>
    %114 = arith.addf %109, %113 : vector<2x32xf32>
    %115 = math.tanh %114 : vector<2x32xf32>
    %cst_34 = arith.constant 1.000000e+00 : f32
    %116 = vector.broadcast %cst_34 : f32 to vector<2x32xf32>
    %117 = arith.subf %116, %106 : vector<2x32xf32>
    %118 = arith.mulf %117, %115 : vector<2x32xf32>
    %119 = arith.mulf %106, %64 : vector<2x32xf32>
    %120 = arith.addf %118, %119 : vector<2x32xf32>
    %121 = arith.index_cast %c1_i32 : i32 to index
    %c0_35 = arith.constant 0 : index
    %c0_36 = arith.constant 0 : index
    %122 = vector.load %arg9[%121, %c0_35, %c0_36] : memref<8x2x32xf32, #tpu.memory_space<vmem>>, vector<1x2x32xf32>
    %123 = vector.shape_cast %122 : vector<1x2x32xf32> to vector<2x32xf32>
    %124 = vector.shape_cast %120 : vector<2x32xf32> to vector<1x2x32xf32>
    tpu.vector_store %arg9[%121, %c0_35, %c0_36], %124 {strides = array<i32>} : memref<8x2x32xf32, #tpu.memory_space<vmem>>, vector<1x2x32xf32>,
    %c2_i32 = arith.constant 2 : i32
    %125 = arith.index_cast %c2_i32 : i32 to index
    %c0_37 = arith.constant 0 : index
    %c0_38 = arith.constant 0 : index
    %126 = vector.load %arg1[%125, %c0_37, %c0_38] : memref<8x2x96xf32, #tpu.memory_space<vmem>>, vector<1x2x96xf32>
    %127 = vector.shape_cast %126 : vector<1x2x96xf32> to vector<2x96xf32>
    %cst_39 = arith.constant dense<0.000000e+00> : vector<2x96xf32>
    %128 = tpu.matmul %94, %3, %cst_39 {dimension_numbers = #tpu.dot_dimension_numbers<[1], [0], [0], [1], [0, 0, 1, 1], [], []>} : vector<2x32xf32>, vector<32x96xf32>, vector<2x96xf32> -> vector<2x96xf32>
    %129 = vector.extract_strided_slice %127 {offsets = [0, 0], sizes = [2, 64], strides = [1, 1]} : vector<2x96xf32> to vector<2x64xf32>
    %130 = vector.extract_strided_slice %128 {offsets = [0, 0], sizes = [2, 64], strides = [1, 1]} : vector<2x96xf32> to vector<2x64xf32>
    %131 = arith.addf %129, %130 : vector<2x64xf32>
    %132 = arith.negf %131 : vector<2x64xf32>
    %133 = math.exp %132 : vector<2x64xf32>
    %cst_40 = arith.constant 1.000000e+00 : f32
    %134 = vector.broadcast %cst_40 : f32 to vector<2x64xf32>
    %135 = arith.addf %134, %133 : vector<2x64xf32>
    %136 = arith.divf %134, %135 : vector<2x64xf32>
    %137 = vector.extract_strided_slice %136 {offsets = [0, 0], sizes = [2, 32], strides = [1, 1]} : vector<2x64xf32> to vector<2x32xf32>
    %138 = vector.extract_strided_slice %136 {offsets = [0, 32], sizes = [2, 32], strides = [1, 1]} : vector<2x64xf32> to vector<2x32xf32>
    %139 = vector.extract_strided_slice %127 {offsets = [0, 64], sizes = [2, 32], strides = [1, 1]} : vector<2x96xf32> to vector<2x32xf32>
    %140 = vector.extract_strided_slice %128 {offsets = [0, 64], sizes = [2, 32], strides = [1, 1]} : vector<2x96xf32> to vector<2x32xf32>
    %141 = vector.broadcast %4 : vector<1x32xf32> to vector<2x32xf32>
    %142 = arith.addf %140, %141 : vector<2x32xf32>
    %143 = arith.mulf %137, %142 : vector<2x32xf32>
    %144 = arith.addf %139, %143 : vector<2x32xf32>
    %145 = math.tanh %144 : vector<2x32xf32>
    %cst_41 = arith.constant 1.000000e+00 : f32
    %146 = vector.broadcast %cst_41 : f32 to vector<2x32xf32>
    %147 = arith.subf %146, %138 : vector<2x32xf32>
    %148 = arith.mulf %147, %145 : vector<2x32xf32>
    %149 = arith.mulf %138, %94 : vector<2x32xf32>
    %150 = arith.addf %148, %149 : vector<2x32xf32>
    %151 = tpu.concatenate %150, %120 in 1 : vector<2x32xf32>, vector<2x32xf32> -> vector<2x64xf32>
    %cst_42 = arith.constant dense<0.000000e+00> : vector<2x128xf32>
    %152 = tpu.matmul %151, %5, %cst_42 {dimension_numbers = #tpu.dot_dimension_numbers<[1], [0], [0], [1], [0, 0, 1, 1], [], []>} : vector<2x64xf32>, vector<64x128xf32>, vector<2x128xf32> -> vector<2x128xf32>
    %153 = vector.extract_strided_slice %152 {offsets = [0, 0], sizes = [2, 64], strides = [1, 1]} : vector<2x128xf32> to vector<2x64xf32>
    %154 = vector.broadcast %6 : vector<1x64xf32> to vector<2x64xf32>
    %155 = arith.addf %153, %154 : vector<2x64xf32>
    %156 = arith.negf %155 : vector<2x64xf32>
    %157 = math.exp %156 : vector<2x64xf32>
    %cst_43 = arith.constant 1.000000e+00 : f32
    %158 = vector.broadcast %cst_43 : f32 to vector<2x64xf32>
    %159 = arith.addf %158, %157 : vector<2x64xf32>
    %160 = arith.divf %158, %159 : vector<2x64xf32>
    %161 = vector.extract_strided_slice %160 {offsets = [0, 0], sizes = [2, 32], strides = [1, 1]} : vector<2x64xf32> to vector<2x32xf32>
    %162 = vector.extract_strided_slice %160 {offsets = [0, 32], sizes = [2, 32], strides = [1, 1]} : vector<2x64xf32> to vector<2x32xf32>
    %163 = vector.extract_strided_slice %152 {offsets = [0, 64], sizes = [2, 32], strides = [1, 1]} : vector<2x128xf32> to vector<2x32xf32>
    %164 = vector.broadcast %7 : vector<1x32xf32> to vector<2x32xf32>
    %165 = arith.addf %163, %164 : vector<2x32xf32>
    %166 = vector.extract_strided_slice %152 {offsets = [0, 96], sizes = [2, 32], strides = [1, 1]} : vector<2x128xf32> to vector<2x32xf32>
    %167 = vector.broadcast %8 : vector<1x32xf32> to vector<2x32xf32>
    %168 = arith.addf %166, %167 : vector<2x32xf32>
    %169 = arith.mulf %161, %168 : vector<2x32xf32>
    %170 = arith.addf %165, %169 : vector<2x32xf32>
    %171 = math.tanh %170 : vector<2x32xf32>
    %cst_44 = arith.constant 1.000000e+00 : f32
    %172 = vector.broadcast %cst_44 : f32 to vector<2x32xf32>
    %173 = arith.subf %172, %162 : vector<2x32xf32>
    %174 = arith.mulf %173, %171 : vector<2x32xf32>
    %175 = arith.mulf %162, %120 : vector<2x32xf32>
    %176 = arith.addf %174, %175 : vector<2x32xf32>
    %177 = arith.index_cast %c2_i32 : i32 to index
    %c0_45 = arith.constant 0 : index
    %c0_46 = arith.constant 0 : index
    %178 = vector.load %arg9[%177, %c0_45, %c0_46] : memref<8x2x32xf32, #tpu.memory_space<vmem>>, vector<1x2x32xf32>
    %179 = vector.shape_cast %178 : vector<1x2x32xf32> to vector<2x32xf32>
    %180 = vector.shape_cast %176 : vector<2x32xf32> to vector<1x2x32xf32>
    tpu.vector_store %arg9[%177, %c0_45, %c0_46], %180 {strides = array<i32>} : memref<8x2x32xf32, #tpu.memory_space<vmem>>, vector<1x2x32xf32>,
    %c3_i32 = arith.constant 3 : i32
    %181 = arith.index_cast %c3_i32 : i32 to index
    %c0_47 = arith.constant 0 : index
    %c0_48 = arith.constant 0 : index
    %182 = vector.load %arg1[%181, %c0_47, %c0_48] : memref<8x2x96xf32, #tpu.memory_space<vmem>>, vector<1x2x96xf32>
    %183 = vector.shape_cast %182 : vector<1x2x96xf32> to vector<2x96xf32>
    %cst_49 = arith.constant dense<0.000000e+00> : vector<2x96xf32>
    %184 = tpu.matmul %150, %3, %cst_49 {dimension_numbers = #tpu.dot_dimension_numbers<[1], [0], [0], [1], [0, 0, 1, 1], [], []>} : vector<2x32xf32>, vector<32x96xf32>, vector<2x96xf32> -> vector<2x96xf32>
    %185 = vector.extract_strided_slice %183 {offsets = [0, 0], sizes = [2, 64], strides = [1, 1]} : vector<2x96xf32> to vector<2x64xf32>
    %186 = vector.extract_strided_slice %184 {offsets = [0, 0], sizes = [2, 64], strides = [1, 1]} : vector<2x96xf32> to vector<2x64xf32>
    %187 = arith.addf %185, %186 : vector<2x64xf32>
    %188 = arith.negf %187 : vector<2x64xf32>
    %189 = math.exp %188 : vector<2x64xf32>
    %cst_50 = arith.constant 1.000000e+00 : f32
    %190 = vector.broadcast %cst_50 : f32 to vector<2x64xf32>
    %191 = arith.addf %190, %189 : vector<2x64xf32>
    %192 = arith.divf %190, %191 : vector<2x64xf32>
    %193 = vector.extract_strided_slice %192 {offsets = [0, 0], sizes = [2, 32], strides = [1, 1]} : vector<2x64xf32> to vector<2x32xf32>
    %194 = vector.extract_strided_slice %192 {offsets = [0, 32], sizes = [2, 32], strides = [1, 1]} : vector<2x64xf32> to vector<2x32xf32>
    %195 = vector.extract_strided_slice %183 {offsets = [0, 64], sizes = [2, 32], strides = [1, 1]} : vector<2x96xf32> to vector<2x32xf32>
    %196 = vector.extract_strided_slice %184 {offsets = [0, 64], sizes = [2, 32], strides = [1, 1]} : vector<2x96xf32> to vector<2x32xf32>
    %197 = vector.broadcast %4 : vector<1x32xf32> to vector<2x32xf32>
    %198 = arith.addf %196, %197 : vector<2x32xf32>
    %199 = arith.mulf %193, %198 : vector<2x32xf32>
    %200 = arith.addf %195, %199 : vector<2x32xf32>
    %201 = math.tanh %200 : vector<2x32xf32>
    %cst_51 = arith.constant 1.000000e+00 : f32
    %202 = vector.broadcast %cst_51 : f32 to vector<2x32xf32>
    %203 = arith.subf %202, %194 : vector<2x32xf32>
    %204 = arith.mulf %203, %201 : vector<2x32xf32>
    %205 = arith.mulf %194, %150 : vector<2x32xf32>
    %206 = arith.addf %204, %205 : vector<2x32xf32>
    %207 = tpu.concatenate %206, %176 in 1 : vector<2x32xf32>, vector<2x32xf32> -> vector<2x64xf32>
    %cst_52 = arith.constant dense<0.000000e+00> : vector<2x128xf32>
    %208 = tpu.matmul %207, %5, %cst_52 {dimension_numbers = #tpu.dot_dimension_numbers<[1], [0], [0], [1], [0, 0, 1, 1], [], []>} : vector<2x64xf32>, vector<64x128xf32>, vector<2x128xf32> -> vector<2x128xf32>
    %209 = vector.extract_strided_slice %208 {offsets = [0, 0], sizes = [2, 64], strides = [1, 1]} : vector<2x128xf32> to vector<2x64xf32>
    %210 = vector.broadcast %6 : vector<1x64xf32> to vector<2x64xf32>
    %211 = arith.addf %209, %210 : vector<2x64xf32>
    %212 = arith.negf %211 : vector<2x64xf32>
    %213 = math.exp %212 : vector<2x64xf32>
    %cst_53 = arith.constant 1.000000e+00 : f32
    %214 = vector.broadcast %cst_53 : f32 to vector<2x64xf32>
    %215 = arith.addf %214, %213 : vector<2x64xf32>
    %216 = arith.divf %214, %215 : vector<2x64xf32>
    %217 = vector.extract_strided_slice %216 {offsets = [0, 0], sizes = [2, 32], strides = [1, 1]} : vector<2x64xf32> to vector<2x32xf32>
    %218 = vector.extract_strided_slice %216 {offsets = [0, 32], sizes = [2, 32], strides = [1, 1]} : vector<2x64xf32> to vector<2x32xf32>
    %219 = vector.extract_strided_slice %208 {offsets = [0, 64], sizes = [2, 32], strides = [1, 1]} : vector<2x128xf32> to vector<2x32xf32>
    %220 = vector.broadcast %7 : vector<1x32xf32> to vector<2x32xf32>
    %221 = arith.addf %219, %220 : vector<2x32xf32>
    %222 = vector.extract_strided_slice %208 {offsets = [0, 96], sizes = [2, 32], strides = [1, 1]} : vector<2x128xf32> to vector<2x32xf32>
    %223 = vector.broadcast %8 : vector<1x32xf32> to vector<2x32xf32>
    %224 = arith.addf %222, %223 : vector<2x32xf32>
    %225 = arith.mulf %217, %224 : vector<2x32xf32>
    %226 = arith.addf %221, %225 : vector<2x32xf32>
    %227 = math.tanh %226 : vector<2x32xf32>
    %cst_54 = arith.constant 1.000000e+00 : f32
    %228 = vector.broadcast %cst_54 : f32 to vector<2x32xf32>
    %229 = arith.subf %228, %218 : vector<2x32xf32>
    %230 = arith.mulf %229, %227 : vector<2x32xf32>
    %231 = arith.mulf %218, %176 : vector<2x32xf32>
    %232 = arith.addf %230, %231 : vector<2x32xf32>
    %233 = arith.index_cast %c3_i32 : i32 to index
    %c0_55 = arith.constant 0 : index
    %c0_56 = arith.constant 0 : index
    %234 = vector.load %arg9[%233, %c0_55, %c0_56] : memref<8x2x32xf32, #tpu.memory_space<vmem>>, vector<1x2x32xf32>
    %235 = vector.shape_cast %234 : vector<1x2x32xf32> to vector<2x32xf32>
    %236 = vector.shape_cast %232 : vector<2x32xf32> to vector<1x2x32xf32>
    tpu.vector_store %arg9[%233, %c0_55, %c0_56], %236 {strides = array<i32>} : memref<8x2x32xf32, #tpu.memory_space<vmem>>, vector<1x2x32xf32>,
    %c4_i32 = arith.constant 4 : i32
    %237 = arith.index_cast %c4_i32 : i32 to index
    %c0_57 = arith.constant 0 : index
    %c0_58 = arith.constant 0 : index
    %238 = vector.load %arg1[%237, %c0_57, %c0_58] : memref<8x2x96xf32, #tpu.memory_space<vmem>>, vector<1x2x96xf32>
    %239 = vector.shape_cast %238 : vector<1x2x96xf32> to vector<2x96xf32>
    %cst_59 = arith.constant dense<0.000000e+00> : vector<2x96xf32>
    %240 = tpu.matmul %206, %3, %cst_59 {dimension_numbers = #tpu.dot_dimension_numbers<[1], [0], [0], [1], [0, 0, 1, 1], [], []>} : vector<2x32xf32>, vector<32x96xf32>, vector<2x96xf32> -> vector<2x96xf32>
    %241 = vector.extract_strided_slice %239 {offsets = [0, 0], sizes = [2, 64], strides = [1, 1]} : vector<2x96xf32> to vector<2x64xf32>
    %242 = vector.extract_strided_slice %240 {offsets = [0, 0], sizes = [2, 64], strides = [1, 1]} : vector<2x96xf32> to vector<2x64xf32>
    %243 = arith.addf %241, %242 : vector<2x64xf32>
    %244 = arith.negf %243 : vector<2x64xf32>
    %245 = math.exp %244 : vector<2x64xf32>
    %cst_60 = arith.constant 1.000000e+00 : f32
    %246 = vector.broadcast %cst_60 : f32 to vector<2x64xf32>
    %247 = arith.addf %246, %245 : vector<2x64xf32>
    %248 = arith.divf %246, %247 : vector<2x64xf32>
    %249 = vector.extract_strided_slice %248 {offsets = [0, 0], sizes = [2, 32], strides = [1, 1]} : vector<2x64xf32> to vector<2x32xf32>
    %250 = vector.extract_strided_slice %248 {offsets = [0, 32], sizes = [2, 32], strides = [1, 1]} : vector<2x64xf32> to vector<2x32xf32>
    %251 = vector.extract_strided_slice %239 {offsets = [0, 64], sizes = [2, 32], strides = [1, 1]} : vector<2x96xf32> to vector<2x32xf32>
    %252 = vector.extract_strided_slice %240 {offsets = [0, 64], sizes = [2, 32], strides = [1, 1]} : vector<2x96xf32> to vector<2x32xf32>
    %253 = vector.broadcast %4 : vector<1x32xf32> to vector<2x32xf32>
    %254 = arith.addf %252, %253 : vector<2x32xf32>
    %255 = arith.mulf %249, %254 : vector<2x32xf32>
    %256 = arith.addf %251, %255 : vector<2x32xf32>
    %257 = math.tanh %256 : vector<2x32xf32>
    %cst_61 = arith.constant 1.000000e+00 : f32
    %258 = vector.broadcast %cst_61 : f32 to vector<2x32xf32>
    %259 = arith.subf %258, %250 : vector<2x32xf32>
    %260 = arith.mulf %259, %257 : vector<2x32xf32>
    %261 = arith.mulf %250, %206 : vector<2x32xf32>
    %262 = arith.addf %260, %261 : vector<2x32xf32>
    %263 = tpu.concatenate %262, %232 in 1 : vector<2x32xf32>, vector<2x32xf32> -> vector<2x64xf32>
    %cst_62 = arith.constant dense<0.000000e+00> : vector<2x128xf32>
    %264 = tpu.matmul %263, %5, %cst_62 {dimension_numbers = #tpu.dot_dimension_numbers<[1], [0], [0], [1], [0, 0, 1, 1], [], []>} : vector<2x64xf32>, vector<64x128xf32>, vector<2x128xf32> -> vector<2x128xf32>
    %265 = vector.extract_strided_slice %264 {offsets = [0, 0], sizes = [2, 64], strides = [1, 1]} : vector<2x128xf32> to vector<2x64xf32>
    %266 = vector.broadcast %6 : vector<1x64xf32> to vector<2x64xf32>
    %267 = arith.addf %265, %266 : vector<2x64xf32>
    %268 = arith.negf %267 : vector<2x64xf32>
    %269 = math.exp %268 : vector<2x64xf32>
    %cst_63 = arith.constant 1.000000e+00 : f32
    %270 = vector.broadcast %cst_63 : f32 to vector<2x64xf32>
    %271 = arith.addf %270, %269 : vector<2x64xf32>
    %272 = arith.divf %270, %271 : vector<2x64xf32>
    %273 = vector.extract_strided_slice %272 {offsets = [0, 0], sizes = [2, 32], strides = [1, 1]} : vector<2x64xf32> to vector<2x32xf32>
    %274 = vector.extract_strided_slice %272 {offsets = [0, 32], sizes = [2, 32], strides = [1, 1]} : vector<2x64xf32> to vector<2x32xf32>
    %275 = vector.extract_strided_slice %264 {offsets = [0, 64], sizes = [2, 32], strides = [1, 1]} : vector<2x128xf32> to vector<2x32xf32>
    %276 = vector.broadcast %7 : vector<1x32xf32> to vector<2x32xf32>
    %277 = arith.addf %275, %276 : vector<2x32xf32>
    %278 = vector.extract_strided_slice %264 {offsets = [0, 96], sizes = [2, 32], strides = [1, 1]} : vector<2x128xf32> to vector<2x32xf32>
    %279 = vector.broadcast %8 : vector<1x32xf32> to vector<2x32xf32>
    %280 = arith.addf %278, %279 : vector<2x32xf32>
    %281 = arith.mulf %273, %280 : vector<2x32xf32>
    %282 = arith.addf %277, %281 : vector<2x32xf32>
    %283 = math.tanh %282 : vector<2x32xf32>
    %cst_64 = arith.constant 1.000000e+00 : f32
    %284 = vector.broadcast %cst_64 : f32 to vector<2x32xf32>
    %285 = arith.subf %284, %274 : vector<2x32xf32>
    %286 = arith.mulf %285, %283 : vector<2x32xf32>
    %287 = arith.mulf %274, %232 : vector<2x32xf32>
    %288 = arith.addf %286, %287 : vector<2x32xf32>
    %289 = arith.index_cast %c4_i32 : i32 to index
    %c0_65 = arith.constant 0 : index
    %c0_66 = arith.constant 0 : index
    %290 = vector.load %arg9[%289, %c0_65, %c0_66] : memref<8x2x32xf32, #tpu.memory_space<vmem>>, vector<1x2x32xf32>
    %291 = vector.shape_cast %290 : vector<1x2x32xf32> to vector<2x32xf32>
    %292 = vector.shape_cast %288 : vector<2x32xf32> to vector<1x2x32xf32>
    tpu.vector_store %arg9[%289, %c0_65, %c0_66], %292 {strides = array<i32>} : memref<8x2x32xf32, #tpu.memory_space<vmem>>, vector<1x2x32xf32>,
    %c5_i32 = arith.constant 5 : i32
    %293 = arith.index_cast %c5_i32 : i32 to index
    %c0_67 = arith.constant 0 : index
    %c0_68 = arith.constant 0 : index
    %294 = vector.load %arg1[%293, %c0_67, %c0_68] : memref<8x2x96xf32, #tpu.memory_space<vmem>>, vector<1x2x96xf32>
    %295 = vector.shape_cast %294 : vector<1x2x96xf32> to vector<2x96xf32>
    %cst_69 = arith.constant dense<0.000000e+00> : vector<2x96xf32>
    %296 = tpu.matmul %262, %3, %cst_69 {dimension_numbers = #tpu.dot_dimension_numbers<[1], [0], [0], [1], [0, 0, 1, 1], [], []>} : vector<2x32xf32>, vector<32x96xf32>, vector<2x96xf32> -> vector<2x96xf32>
    %297 = vector.extract_strided_slice %295 {offsets = [0, 0], sizes = [2, 64], strides = [1, 1]} : vector<2x96xf32> to vector<2x64xf32>
    %298 = vector.extract_strided_slice %296 {offsets = [0, 0], sizes = [2, 64], strides = [1, 1]} : vector<2x96xf32> to vector<2x64xf32>
    %299 = arith.addf %297, %298 : vector<2x64xf32>
    %300 = arith.negf %299 : vector<2x64xf32>
    %301 = math.exp %300 : vector<2x64xf32>
    %cst_70 = arith.constant 1.000000e+00 : f32
    %302 = vector.broadcast %cst_70 : f32 to vector<2x64xf32>
    %303 = arith.addf %302, %301 : vector<2x64xf32>
    %304 = arith.divf %302, %303 : vector<2x64xf32>
    %305 = vector.extract_strided_slice %304 {offsets = [0, 0], sizes = [2, 32], strides = [1, 1]} : vector<2x64xf32> to vector<2x32xf32>
    %306 = vector.extract_strided_slice %304 {offsets = [0, 32], sizes = [2, 32], strides = [1, 1]} : vector<2x64xf32> to vector<2x32xf32>
    %307 = vector.extract_strided_slice %295 {offsets = [0, 64], sizes = [2, 32], strides = [1, 1]} : vector<2x96xf32> to vector<2x32xf32>
    %308 = vector.extract_strided_slice %296 {offsets = [0, 64], sizes = [2, 32], strides = [1, 1]} : vector<2x96xf32> to vector<2x32xf32>
    %309 = vector.broadcast %4 : vector<1x32xf32> to vector<2x32xf32>
    %310 = arith.addf %308, %309 : vector<2x32xf32>
    %311 = arith.mulf %305, %310 : vector<2x32xf32>
    %312 = arith.addf %307, %311 : vector<2x32xf32>
    %313 = math.tanh %312 : vector<2x32xf32>
    %cst_71 = arith.constant 1.000000e+00 : f32
    %314 = vector.broadcast %cst_71 : f32 to vector<2x32xf32>
    %315 = arith.subf %314, %306 : vector<2x32xf32>
    %316 = arith.mulf %315, %313 : vector<2x32xf32>
    %317 = arith.mulf %306, %262 : vector<2x32xf32>
    %318 = arith.addf %316, %317 : vector<2x32xf32>
    %319 = tpu.concatenate %318, %288 in 1 : vector<2x32xf32>, vector<2x32xf32> -> vector<2x64xf32>
    %cst_72 = arith.constant dense<0.000000e+00> : vector<2x128xf32>
    %320 = tpu.matmul %319, %5, %cst_72 {dimension_numbers = #tpu.dot_dimension_numbers<[1], [0], [0], [1], [0, 0, 1, 1], [], []>} : vector<2x64xf32>, vector<64x128xf32>, vector<2x128xf32> -> vector<2x128xf32>
    %321 = vector.extract_strided_slice %320 {offsets = [0, 0], sizes = [2, 64], strides = [1, 1]} : vector<2x128xf32> to vector<2x64xf32>
    %322 = vector.broadcast %6 : vector<1x64xf32> to vector<2x64xf32>
    %323 = arith.addf %321, %322 : vector<2x64xf32>
    %324 = arith.negf %323 : vector<2x64xf32>
    %325 = math.exp %324 : vector<2x64xf32>
    %cst_73 = arith.constant 1.000000e+00 : f32
    %326 = vector.broadcast %cst_73 : f32 to vector<2x64xf32>
    %327 = arith.addf %326, %325 : vector<2x64xf32>
    %328 = arith.divf %326, %327 : vector<2x64xf32>
    %329 = vector.extract_strided_slice %328 {offsets = [0, 0], sizes = [2, 32], strides = [1, 1]} : vector<2x64xf32> to vector<2x32xf32>
    %330 = vector.extract_strided_slice %328 {offsets = [0, 32], sizes = [2, 32], strides = [1, 1]} : vector<2x64xf32> to vector<2x32xf32>
    %331 = vector.extract_strided_slice %320 {offsets = [0, 64], sizes = [2, 32], strides = [1, 1]} : vector<2x128xf32> to vector<2x32xf32>
    %332 = vector.broadcast %7 : vector<1x32xf32> to vector<2x32xf32>
    %333 = arith.addf %331, %332 : vector<2x32xf32>
    %334 = vector.extract_strided_slice %320 {offsets = [0, 96], sizes = [2, 32], strides = [1, 1]} : vector<2x128xf32> to vector<2x32xf32>
    %335 = vector.broadcast %8 : vector<1x32xf32> to vector<2x32xf32>
    %336 = arith.addf %334, %335 : vector<2x32xf32>
    %337 = arith.mulf %329, %336 : vector<2x32xf32>
    %338 = arith.addf %333, %337 : vector<2x32xf32>
    %339 = math.tanh %338 : vector<2x32xf32>
    %cst_74 = arith.constant 1.000000e+00 : f32
    %340 = vector.broadcast %cst_74 : f32 to vector<2x32xf32>
    %341 = arith.subf %340, %330 : vector<2x32xf32>
    %342 = arith.mulf %341, %339 : vector<2x32xf32>
    %343 = arith.mulf %330, %288 : vector<2x32xf32>
    %344 = arith.addf %342, %343 : vector<2x32xf32>
    %345 = arith.index_cast %c5_i32 : i32 to index
    %c0_75 = arith.constant 0 : index
    %c0_76 = arith.constant 0 : index
    %346 = vector.load %arg9[%345, %c0_75, %c0_76] : memref<8x2x32xf32, #tpu.memory_space<vmem>>, vector<1x2x32xf32>
    %347 = vector.shape_cast %346 : vector<1x2x32xf32> to vector<2x32xf32>
    %348 = vector.shape_cast %344 : vector<2x32xf32> to vector<1x2x32xf32>
    tpu.vector_store %arg9[%345, %c0_75, %c0_76], %348 {strides = array<i32>} : memref<8x2x32xf32, #tpu.memory_space<vmem>>, vector<1x2x32xf32>,
    %c6_i32 = arith.constant 6 : i32
    %349 = arith.index_cast %c6_i32 : i32 to index
    %c0_77 = arith.constant 0 : index
    %c0_78 = arith.constant 0 : index
    %350 = vector.load %arg1[%349, %c0_77, %c0_78] : memref<8x2x96xf32, #tpu.memory_space<vmem>>, vector<1x2x96xf32>
    %351 = vector.shape_cast %350 : vector<1x2x96xf32> to vector<2x96xf32>
    %cst_79 = arith.constant dense<0.000000e+00> : vector<2x96xf32>
    %352 = tpu.matmul %318, %3, %cst_79 {dimension_numbers = #tpu.dot_dimension_numbers<[1], [0], [0], [1], [0, 0, 1, 1], [], []>} : vector<2x32xf32>, vector<32x96xf32>, vector<2x96xf32> -> vector<2x96xf32>
    %353 = vector.extract_strided_slice %351 {offsets = [0, 0], sizes = [2, 64], strides = [1, 1]} : vector<2x96xf32> to vector<2x64xf32>
    %354 = vector.extract_strided_slice %352 {offsets = [0, 0], sizes = [2, 64], strides = [1, 1]} : vector<2x96xf32> to vector<2x64xf32>
    %355 = arith.addf %353, %354 : vector<2x64xf32>
    %356 = arith.negf %355 : vector<2x64xf32>
    %357 = math.exp %356 : vector<2x64xf32>
    %cst_80 = arith.constant 1.000000e+00 : f32
    %358 = vector.broadcast %cst_80 : f32 to vector<2x64xf32>
    %359 = arith.addf %358, %357 : vector<2x64xf32>
    %360 = arith.divf %358, %359 : vector<2x64xf32>
    %361 = vector.extract_strided_slice %360 {offsets = [0, 0], sizes = [2, 32], strides = [1, 1]} : vector<2x64xf32> to vector<2x32xf32>
    %362 = vector.extract_strided_slice %360 {offsets = [0, 32], sizes = [2, 32], strides = [1, 1]} : vector<2x64xf32> to vector<2x32xf32>
    %363 = vector.extract_strided_slice %351 {offsets = [0, 64], sizes = [2, 32], strides = [1, 1]} : vector<2x96xf32> to vector<2x32xf32>
    %364 = vector.extract_strided_slice %352 {offsets = [0, 64], sizes = [2, 32], strides = [1, 1]} : vector<2x96xf32> to vector<2x32xf32>
    %365 = vector.broadcast %4 : vector<1x32xf32> to vector<2x32xf32>
    %366 = arith.addf %364, %365 : vector<2x32xf32>
    %367 = arith.mulf %361, %366 : vector<2x32xf32>
    %368 = arith.addf %363, %367 : vector<2x32xf32>
    %369 = math.tanh %368 : vector<2x32xf32>
    %cst_81 = arith.constant 1.000000e+00 : f32
    %370 = vector.broadcast %cst_81 : f32 to vector<2x32xf32>
    %371 = arith.subf %370, %362 : vector<2x32xf32>
    %372 = arith.mulf %371, %369 : vector<2x32xf32>
    %373 = arith.mulf %362, %318 : vector<2x32xf32>
    %374 = arith.addf %372, %373 : vector<2x32xf32>
    %375 = tpu.concatenate %374, %344 in 1 : vector<2x32xf32>, vector<2x32xf32> -> vector<2x64xf32>
    %cst_82 = arith.constant dense<0.000000e+00> : vector<2x128xf32>
    %376 = tpu.matmul %375, %5, %cst_82 {dimension_numbers = #tpu.dot_dimension_numbers<[1], [0], [0], [1], [0, 0, 1, 1], [], []>} : vector<2x64xf32>, vector<64x128xf32>, vector<2x128xf32> -> vector<2x128xf32>
    %377 = vector.extract_strided_slice %376 {offsets = [0, 0], sizes = [2, 64], strides = [1, 1]} : vector<2x128xf32> to vector<2x64xf32>
    %378 = vector.broadcast %6 : vector<1x64xf32> to vector<2x64xf32>
    %379 = arith.addf %377, %378 : vector<2x64xf32>
    %380 = arith.negf %379 : vector<2x64xf32>
    %381 = math.exp %380 : vector<2x64xf32>
    %cst_83 = arith.constant 1.000000e+00 : f32
    %382 = vector.broadcast %cst_83 : f32 to vector<2x64xf32>
    %383 = arith.addf %382, %381 : vector<2x64xf32>
    %384 = arith.divf %382, %383 : vector<2x64xf32>
    %385 = vector.extract_strided_slice %384 {offsets = [0, 0], sizes = [2, 32], strides = [1, 1]} : vector<2x64xf32> to vector<2x32xf32>
    %386 = vector.extract_strided_slice %384 {offsets = [0, 32], sizes = [2, 32], strides = [1, 1]} : vector<2x64xf32> to vector<2x32xf32>
    %387 = vector.extract_strided_slice %376 {offsets = [0, 64], sizes = [2, 32], strides = [1, 1]} : vector<2x128xf32> to vector<2x32xf32>
    %388 = vector.broadcast %7 : vector<1x32xf32> to vector<2x32xf32>
    %389 = arith.addf %387, %388 : vector<2x32xf32>
    %390 = vector.extract_strided_slice %376 {offsets = [0, 96], sizes = [2, 32], strides = [1, 1]} : vector<2x128xf32> to vector<2x32xf32>
    %391 = vector.broadcast %8 : vector<1x32xf32> to vector<2x32xf32>
    %392 = arith.addf %390, %391 : vector<2x32xf32>
    %393 = arith.mulf %385, %392 : vector<2x32xf32>
    %394 = arith.addf %389, %393 : vector<2x32xf32>
    %395 = math.tanh %394 : vector<2x32xf32>
    %cst_84 = arith.constant 1.000000e+00 : f32
    %396 = vector.broadcast %cst_84 : f32 to vector<2x32xf32>
    %397 = arith.subf %396, %386 : vector<2x32xf32>
    %398 = arith.mulf %397, %395 : vector<2x32xf32>
    %399 = arith.mulf %386, %344 : vector<2x32xf32>
    %400 = arith.addf %398, %399 : vector<2x32xf32>
    %401 = arith.index_cast %c6_i32 : i32 to index
    %c0_85 = arith.constant 0 : index
    %c0_86 = arith.constant 0 : index
    %402 = vector.load %arg9[%401, %c0_85, %c0_86] : memref<8x2x32xf32, #tpu.memory_space<vmem>>, vector<1x2x32xf32>
    %403 = vector.shape_cast %402 : vector<1x2x32xf32> to vector<2x32xf32>
    %404 = vector.shape_cast %400 : vector<2x32xf32> to vector<1x2x32xf32>
    tpu.vector_store %arg9[%401, %c0_85, %c0_86], %404 {strides = array<i32>} : memref<8x2x32xf32, #tpu.memory_space<vmem>>, vector<1x2x32xf32>,
    %c7_i32 = arith.constant 7 : i32
    %405 = arith.index_cast %c7_i32 : i32 to index
    %c0_87 = arith.constant 0 : index
    %c0_88 = arith.constant 0 : index
    %406 = vector.load %arg1[%405, %c0_87, %c0_88] : memref<8x2x96xf32, #tpu.memory_space<vmem>>, vector<1x2x96xf32>
    %407 = vector.shape_cast %406 : vector<1x2x96xf32> to vector<2x96xf32>
    %cst_89 = arith.constant dense<0.000000e+00> : vector<2x96xf32>
    %408 = tpu.matmul %374, %3, %cst_89 {dimension_numbers = #tpu.dot_dimension_numbers<[1], [0], [0], [1], [0, 0, 1, 1], [], []>} : vector<2x32xf32>, vector<32x96xf32>, vector<2x96xf32> -> vector<2x96xf32>
    %409 = vector.extract_strided_slice %407 {offsets = [0, 0], sizes = [2, 64], strides = [1, 1]} : vector<2x96xf32> to vector<2x64xf32>
    %410 = vector.extract_strided_slice %408 {offsets = [0, 0], sizes = [2, 64], strides = [1, 1]} : vector<2x96xf32> to vector<2x64xf32>
    %411 = arith.addf %409, %410 : vector<2x64xf32>
    %412 = arith.negf %411 : vector<2x64xf32>
    %413 = math.exp %412 : vector<2x64xf32>
    %cst_90 = arith.constant 1.000000e+00 : f32
    %414 = vector.broadcast %cst_90 : f32 to vector<2x64xf32>
    %415 = arith.addf %414, %413 : vector<2x64xf32>
    %416 = arith.divf %414, %415 : vector<2x64xf32>
    %417 = vector.extract_strided_slice %416 {offsets = [0, 0], sizes = [2, 32], strides = [1, 1]} : vector<2x64xf32> to vector<2x32xf32>
    %418 = vector.extract_strided_slice %416 {offsets = [0, 32], sizes = [2, 32], strides = [1, 1]} : vector<2x64xf32> to vector<2x32xf32>
    %419 = vector.extract_strided_slice %407 {offsets = [0, 64], sizes = [2, 32], strides = [1, 1]} : vector<2x96xf32> to vector<2x32xf32>
    %420 = vector.extract_strided_slice %408 {offsets = [0, 64], sizes = [2, 32], strides = [1, 1]} : vector<2x96xf32> to vector<2x32xf32>
    %421 = vector.broadcast %4 : vector<1x32xf32> to vector<2x32xf32>
    %422 = arith.addf %420, %421 : vector<2x32xf32>
    %423 = arith.mulf %417, %422 : vector<2x32xf32>
    %424 = arith.addf %419, %423 : vector<2x32xf32>
    %425 = math.tanh %424 : vector<2x32xf32>
    %cst_91 = arith.constant 1.000000e+00 : f32
    %426 = vector.broadcast %cst_91 : f32 to vector<2x32xf32>
    %427 = arith.subf %426, %418 : vector<2x32xf32>
    %428 = arith.mulf %427, %425 : vector<2x32xf32>
    %429 = arith.mulf %418, %374 : vector<2x32xf32>
    %430 = arith.addf %428, %429 : vector<2x32xf32>
    %431 = tpu.concatenate %430, %400 in 1 : vector<2x32xf32>, vector<2x32xf32> -> vector<2x64xf32>
    %cst_92 = arith.constant dense<0.000000e+00> : vector<2x128xf32>
    %432 = tpu.matmul %431, %5, %cst_92 {dimension_numbers = #tpu.dot_dimension_numbers<[1], [0], [0], [1], [0, 0, 1, 1], [], []>} : vector<2x64xf32>, vector<64x128xf32>, vector<2x128xf32> -> vector<2x128xf32>
    %433 = vector.extract_strided_slice %432 {offsets = [0, 0], sizes = [2, 64], strides = [1, 1]} : vector<2x128xf32> to vector<2x64xf32>
    %434 = vector.broadcast %6 : vector<1x64xf32> to vector<2x64xf32>
    %435 = arith.addf %433, %434 : vector<2x64xf32>
    %436 = arith.negf %435 : vector<2x64xf32>
    %437 = math.exp %436 : vector<2x64xf32>
    %cst_93 = arith.constant 1.000000e+00 : f32
    %438 = vector.broadcast %cst_93 : f32 to vector<2x64xf32>
    %439 = arith.addf %438, %437 : vector<2x64xf32>
    %440 = arith.divf %438, %439 : vector<2x64xf32>
    %441 = vector.extract_strided_slice %440 {offsets = [0, 0], sizes = [2, 32], strides = [1, 1]} : vector<2x64xf32> to vector<2x32xf32>
    %442 = vector.extract_strided_slice %440 {offsets = [0, 32], sizes = [2, 32], strides = [1, 1]} : vector<2x64xf32> to vector<2x32xf32>
    %443 = vector.extract_strided_slice %432 {offsets = [0, 64], sizes = [2, 32], strides = [1, 1]} : vector<2x128xf32> to vector<2x32xf32>
    %444 = vector.broadcast %7 : vector<1x32xf32> to vector<2x32xf32>
    %445 = arith.addf %443, %444 : vector<2x32xf32>
    %446 = vector.extract_strided_slice %432 {offsets = [0, 96], sizes = [2, 32], strides = [1, 1]} : vector<2x128xf32> to vector<2x32xf32>
    %447 = vector.broadcast %8 : vector<1x32xf32> to vector<2x32xf32>
    %448 = arith.addf %446, %447 : vector<2x32xf32>
    %449 = arith.mulf %441, %448 : vector<2x32xf32>
    %450 = arith.addf %445, %449 : vector<2x32xf32>
    %451 = math.tanh %450 : vector<2x32xf32>
    %cst_94 = arith.constant 1.000000e+00 : f32
    %452 = vector.broadcast %cst_94 : f32 to vector<2x32xf32>
    %453 = arith.subf %452, %442 : vector<2x32xf32>
    %454 = arith.mulf %453, %451 : vector<2x32xf32>
    %455 = arith.mulf %442, %400 : vector<2x32xf32>
    %456 = arith.addf %454, %455 : vector<2x32xf32>
    %457 = arith.index_cast %c7_i32 : i32 to index
    %c0_95 = arith.constant 0 : index
    %c0_96 = arith.constant 0 : index
    %458 = vector.load %arg9[%457, %c0_95, %c0_96] : memref<8x2x32xf32, #tpu.memory_space<vmem>>, vector<1x2x32xf32>
    %459 = vector.shape_cast %458 : vector<1x2x32xf32> to vector<2x32xf32>
    %460 = vector.shape_cast %456 : vector<2x32xf32> to vector<1x2x32xf32>
    tpu.vector_store %arg9[%457, %c0_95, %c0_96], %460 {strides = array<i32>} : memref<8x2x32xf32, #tpu.memory_space<vmem>>, vector<1x2x32xf32>,
    %c8_i32 = arith.constant 8 : i32
    %c0_97 = arith.constant 0 : index
    %c0_98 = arith.constant 0 : index
    %c0_99 = arith.constant 0 : index
    %461 = vector.load %arg11[%c0_97, %c0_98, %c0_99] : memref<2x2x32xf32, #tpu.memory_space<vmem>>, vector<1x2x32xf32>
    %462 = vector.shape_cast %461 : vector<1x2x32xf32> to vector<2x32xf32>
    %463 = vector.shape_cast %430 : vector<2x32xf32> to vector<1x2x32xf32>
    tpu.vector_store %arg11[%c0_97, %c0_98, %c0_99], %463 {strides = array<i32>} : memref<2x2x32xf32, #tpu.memory_space<vmem>>, vector<1x2x32xf32>,
    %c1_100 = arith.constant 1 : index
    %c0_101 = arith.constant 0 : index
    %c0_102 = arith.constant 0 : index
    %464 = vector.load %arg11[%c1_100, %c0_101, %c0_102] : memref<2x2x32xf32, #tpu.memory_space<vmem>>, vector<1x2x32xf32>
    %465 = vector.shape_cast %464 : vector<1x2x32xf32> to vector<2x32xf32>
    %466 = vector.shape_cast %456 : vector<2x32xf32> to vector<1x2x32xf32>
    tpu.vector_store %arg11[%c1_100, %c0_101, %c0_102], %466 {strides = array<i32>} : memref<2x2x32xf32, #tpu.memory_space<vmem>>, vector<1x2x32xf32>,
    %c0_103 = arith.constant 0 : index
    %c0_104 = arith.constant 0 : index
    %c0_105 = arith.constant 0 : index
    %467 = vector.load %arg10[%c0_103, %c0_104, %c0_105] : memref<2x2x32xf32, #tpu.memory_space<vmem>>, vector<1x2x32xf32>
    %468 = vector.shape_cast %467 : vector<1x2x32xf32> to vector<2x32xf32>
    %469 = vector.shape_cast %430 : vector<2x32xf32> to vector<1x2x32xf32>
    tpu.vector_store %arg10[%c0_103, %c0_104, %c0_105], %469 {strides = array<i32>} : memref<2x2x32xf32, #tpu.memory_space<vmem>>, vector<1x2x32xf32>,
    %c1_106 = arith.constant 1 : index
    %c0_107 = arith.constant 0 : index
    %c0_108 = arith.constant 0 : index
    %470 = vector.load %arg10[%c1_106, %c0_107, %c0_108] : memref<2x2x32xf32, #tpu.memory_space<vmem>>, vector<1x2x32xf32>
    %471 = vector.shape_cast %470 : vector<1x2x32xf32> to vector<2x32xf32>
    %472 = vector.shape_cast %456 : vector<2x32xf32> to vector<1x2x32xf32>
    tpu.vector_store %arg10[%c1_106, %c0_107, %c0_108], %472 {strides = array<i32>} : memref<2x2x32xf32, #tpu.memory_space<vmem>>, vector<1x2x32xf32>,
    return
  }
  func.func @transform_0(%arg0: i32) -> (i32, i32, i32) {
    %c0_i32 = arith.constant 0 : i32
    %c0_i32_0 = arith.constant 0 : i32
    %c0_i32_1 = arith.constant 0 : i32
    return %arg0, %c0_i32, %c0_i32_0 : i32, i32, i32
  }
  func.func @transform_1(%arg0: i32) -> (i32, i32, i32) {
    %c0_i32 = arith.constant 0 : i32
    %c0_i32_0 = arith.constant 0 : i32
    %c0_i32_1 = arith.constant 0 : i32
    %c0_i32_2 = arith.constant 0 : i32
    return %c0_i32, %c0_i32_0, %c0_i32_1 : i32, i32, i32
  }
  func.func @transform_2(%arg0: i32) -> (i32, i32) {
    %c0_i32 = arith.constant 0 : i32
    %c0_i32_0 = arith.constant 0 : i32
    %c0_i32_1 = arith.constant 0 : i32
    return %c0_i32, %c0_i32_0 : i32, i32
  }
  func.func @transform_3(%arg0: i32) -> (i32, i32) {
    %c0_i32 = arith.constant 0 : i32
    %c0_i32_0 = arith.constant 0 : i32
    %c0_i32_1 = arith.constant 0 : i32
    return %c0_i32, %c0_i32_0 : i32, i32
  }
  func.func @transform_4(%arg0: i32) -> (i32, i32) {
    %c0_i32 = arith.constant 0 : i32
    %c0_i32_0 = arith.constant 0 : i32
    %c0_i32_1 = arith.constant 0 : i32
    return %c0_i32, %c0_i32_0 : i32, i32
  }
  func.func @transform_5(%arg0: i32) -> (i32, i32) {
    %c0_i32 = arith.constant 0 : i32
    %c0_i32_0 = arith.constant 0 : i32
    %c0_i32_1 = arith.constant 0 : i32
    return %c0_i32, %c0_i32_0 : i32, i32
  }
  func.func @transform_6(%arg0: i32) -> (i32, i32) {
    %c0_i32 = arith.constant 0 : i32
    %c0_i32_0 = arith.constant 0 : i32
    %c0_i32_1 = arith.constant 0 : i32
    return %c0_i32, %c0_i32_0 : i32, i32
  }
  func.func @transform_7(%arg0: i32) -> (i32, i32) {
    %c0_i32 = arith.constant 0 : i32
    %c0_i32_0 = arith.constant 0 : i32
    %c0_i32_1 = arith.constant 0 : i32
    return %c0_i32, %c0_i32_0 : i32, i32
  }
  func.func @transform_8(%arg0: i32) -> (i32, i32, i32) {
    %c0_i32 = arith.constant 0 : i32
    %c0_i32_0 = arith.constant 0 : i32
    %c0_i32_1 = arith.constant 0 : i32
    return %arg0, %c0_i32, %c0_i32_0 : i32, i32, i32
  }
  func.func @transform_9(%arg0: i32) -> (i32, i32, i32) {
    %c0_i32 = arith.constant 0 : i32
    %c0_i32_0 = arith.constant 0 : i32
    %c0_i32_1 = arith.constant 0 : i32
    %c0_i32_2 = arith.constant 0 : i32
    return %c0_i32, %c0_i32_0, %c0_i32_1 : i32, i32, i32
  }
}

</mosaic_0001>

<llo_original>
// kernel: gru_forward.1
$region0: #{gru_forward.1}
  #allocation0 [shape = 'u32[]', space=smem, size = 0x4, offset = 0x4, fixed_abs, tag = 'smem constant byte address 0x4 - core index']
  #allocation1 [shape = 'u32[72,128]{1,0:T(1,128)}', space=vmem, size = 0x9000, scoped, tag = 'internal scratch']
  #allocation2 [shape = 'f32[2,2,32]{2,1,0:T(2,128)}', space=vmem, size = 0x800, scoped, tag = 'scratch operand']
  %s0 = inlined_call_operand.vmem [shape: f32[8,2,96], index: 0, kind: input, shape index: {}]
  %s1 = inlined_call_operand.vmem [shape: f32[2,2,32], index: 1, kind: input, shape index: {}]
  %s2 = inlined_call_operand.vmem [shape: f32[32,96], index: 2, kind: input, shape index: {}]
  %s3 = inlined_call_operand.vmem [shape: f32[1,32], index: 3, kind: input, shape index: {}]
  %s4 = inlined_call_operand.vmem [shape: f32[64,128], index: 4, kind: input, shape index: {}]
  %s5 = inlined_call_operand.vmem [shape: f32[1,64], index: 5, kind: input, shape index: {}]
  %s6 = inlined_call_operand.vmem [shape: f32[1,32], index: 6, kind: input, shape index: {}]
  %s7 = inlined_call_operand.vmem [shape: f32[1,32], index: 7, kind: input, shape index: {}]
  %s8 = inlined_call_operand.vmem [shape: f32[8,2,32], index: 8, kind: output, shape index: {0}]
  %s9 = inlined_call_operand.hbm [shape: f32[2,2,32], index: 9, kind: output, shape index: {1}]
  %10 = xla_tuple %s8, %s9
  %s11 = sld [smem:[#allocation0]]
  $region54: #{gru_forward.1} parent=0
    _
  %s13 = ssub.s32 1, %s11
  %s14 = scalar_select 0, %s13, %s11
  $region1: #{gru_forward.1} parent=0
    #allocation3 [shape = 'u8[2048]{0}', space=vmem, size = 0x800, scoped, tag = 'output window, operand 1, single buffered']
    #allocation4 [shape = 's32[1]{0}', space=sflag, size = 0x4, scoped, tag = 'scoped memory for gru_forward.1']
    %15 = vsyncpa [#allocation4], 0
    // Predicated region
    $region2: #{gru_forward.1} parent=1 // pred_check
      _
    $region3: #{gru_forward.1} parent=1 // pred_check_branch
      %17 = sbr.rel (0) target = $region5
    $region4: #{gru_forward.1} parent=1 // pred_region
      _
    $region5: #{gru_forward.1} parent=1 // pred_fallthru
      _
    // Predicated region
    $region6: #{gru_forward.1} parent=1 // pred_check
      _
    $region7: #{gru_forward.1} parent=1 // pred_check_branch
      %19 = sbr.rel (0) target = $region9
    $region8: #{gru_forward.1} parent=1 // pred_region
      _
    $region9: #{gru_forward.1} parent=1 // pred_fallthru
      _
    // Predicated region
    $region10: #{gru_forward.1} parent=1 // pred_check
      _
    $region11: #{gru_forward.1} parent=1 // pred_check_branch
      %21 = sbr.rel (0) target = $region13
    $region12: #{gru_forward.1} parent=1 // pred_region
      _
    $region13: #{gru_forward.1} parent=1 // pred_fallthru
      _
    // Predicated region
    $region14: #{gru_forward.1} parent=1 // pred_check
      _
    $region15: #{gru_forward.1} parent=1 // pred_check_branch
      %23 = sbr.rel (0) target = $region17
    $region16: #{gru_forward.1} parent=1 // pred_region
      _
    $region17: #{gru_forward.1} parent=1 // pred_fallthru
      _
    // Predicated region
    $region18: #{gru_forward.1} parent=1 // pred_check
      _
    $region19: #{gru_forward.1} parent=1 // pred_check_branch
      %25 = sbr.rel (0) target = $region21
    $region20: #{gru_forward.1} parent=1 // pred_region
      _
    $region21: #{gru_forward.1} parent=1 // pred_fallthru
      _
    // Predicated region
    $region22: #{gru_forward.1} parent=1 // pred_check
      _
    $region23: #{gru_forward.1} parent=1 // pred_check_branch
      %27 = sbr.rel (0) target = $region25
    $region24: #{gru_forward.1} parent=1 // pred_region
      _
    $region25: #{gru_forward.1} parent=1 // pred_fallthru
      _
    // Predicated region
    $region26: #{gru_forward.1} parent=1 // pred_check
      _
    $region27: #{gru_forward.1} parent=1 // pred_check_branch
      %29 = sbr.rel (0) target = $region29
    $region28: #{gru_forward.1} parent=1 // pred_region
      _
    $region29: #{gru_forward.1} parent=1 // pred_fallthru
      _
    // Predicated region
    $region30: #{gru_forward.1} parent=1 // pred_check
      _
    $region31: #{gru_forward.1} parent=1 // pred_check_branch
      %31 = sbr.rel (0) target = $region33
    $region32: #{gru_forward.1} parent=1 // pred_region
      _
    $region33: #{gru_forward.1} parent=1 // pred_fallthru
      _
    %p32 = scmp.eq.s32.totalorder 0, 0
    // Predicated region
    $region34: #{gru_forward.1} parent=1 // pred_check
      %p33 = pneg %p32
    $region35: #{gru_forward.1} parent=1 // pred_check_branch
      %35 = sbr.rel (%p33) target = $region37
    $region36: #{gru_forward.1} parent=1 // pred_region
      %v36 = vld [vmem:[%s1] sm:$0x3]
      %v37 = vld [vmem:[%s1 + $0x2] sm:$0x3]
      %vm38 = vcmask 254976
      %39 = vst.msk [vmem:[#allocation2] sm:$0x3] %vm38, %v36
      %40 = vst.msk [vmem:[#allocation2 + $0x2] sm:$0x3] %vm38, %v37
    $region37: #{gru_forward.1} parent=1 // pred_fallthru
      _
    %v41 = vld [vmem:[%s2] sm:$0xff]
    %v42 = vld [vmem:[%s2 + $0x8] sm:$0xff]
    %v43 = vld [vmem:[%s2 + $0x10] sm:$0xff]
    %v44 = vld [vmem:[%s2 + $0x18] sm:$0xff]
    %v45 = vld [vmem:[%s3] sm:$0x1]
    %v46 = vld [vmem:[%s4] sm:$0xff]
    %v47 = vld [vmem:[%s4 + $0x8] sm:$0xff]
    %v48 = vld [vmem:[%s4 + $0x10] sm:$0xff]
    %v49 = vld [vmem:[%s4 + $0x18] sm:$0xff]
    %v50 = vld [vmem:[%s4 + $0x20] sm:$0xff]
    %v51 = vld [vmem:[%s4 + $0x28] sm:$0xff]
    %v52 = vld [vmem:[%s4 + $0x30] sm:$0xff]
    %v53 = vld [vmem:[%s4 + $0x38] sm:$0xff]
    %v54 = vld [vmem:[%s5] sm:$0x1]
    %v55 = vld [vmem:[%s6] sm:$0x1]
    %v56 = vld [vmem:[%s7] sm:$0x1]
    %v57 = vld [vmem:[#allocation2] sm:$0x3]
    %s58 = scalar_lea.vmem [#allocation2], 2
    %v59 = vld [vmem:[%s58] sm:$0x3]
    %v60 = vld [vmem:[%s0] sm:$0x3]
    %vm61 = vcmask 261120
    %v63 = vsel %vm61, %v57, 0
    %65 = vmatpush.msra.mxu0 0.0
    %66 = vmatpush.msra.mxu0 0.0
    %67 = vmatpush.msra.mxu0 0.0
    %68 = vmatpush.msra.mxu0 0.0
    %69 = vmatpush.msra.mxu0 0.0
    %70 = vmatpush.msra.mxu0 0.0
    %71 = vmatpush.msra.mxu0 0.0
    %72 = vmatpush.msra.mxu0 0.0
    %73 = vmatpush.msra.mxu0 0.0
    %74 = vmatpush.msra.mxu0 0.0
    %75 = vmatpush.msra.mxu0 0.0
    %76 = vmatpush.msra.mxu0 0.0
    %77 = vmatpush.msra.mxu0 %v44
    %78 = vmatpush.msra.mxu0 %v43
    %79 = vmatpush.msra.mxu0 %v42
    %80 = vmatpush.msra.mxu0 %v41
    %81 = vmatmul.f32.gmra.mxu0 %v63
    %v82 = vpop.f32.mrf.mxu0
    %v83 = vadd.f32 0.0, %v82
    %84 = vdwg.mxu0
    %v85 = vadd.f32 %v60, %v83
    %v86 = vxor.u32 %v85, 2147483648
    %v87 = vmul.f32 %v86, 1.442695
    %v88 = vpow.pop %v87
    %v89 = vadd.f32 %v88, 1.0
    %v90 = vrcp.pop %v89
    %v91 = vmul.f32 %v89, %v90
    %v92 = vsub.f32 1.0, %v91
    %v93 = vmul.f32 %v90, %v92
    %v94 = vadd.f32 %v90, %v93
    %vm95 = vweird.f32 %v89
    %vm96 = vweird.f32 %v90
    %vm97 = vmor %vm95, %vm96
    %v98 = vsel %vm97, %v90, %v94
    %v99 = vand.u32 2147483647, %v89
    %vm100 = vcmp.eq.f32.partialorder %v99, 8.507059e+37
    %v101 = vand.u32 %v89, 2147483648
    %v102 = vor.u32 1.1754944e-38, %v101
    %v103 = vsel %vm100, %v102, %v98
    %v104 = vmul.f32 1.0, %v103
    %v106 = vperm.slane %v45, 0
    %107 = vrot.lane.b32.xlu0 %v106, 64
    %v108 = vpop.permute.xlu0 %107
    %v110 = vadd.f32 %v83, %v108
    %112 = vrot.lane.b32.xlu0 %v110, 64
    %v113 = vpop.permute.xlu0 %112
    %v115 = vmul.f32 %v104, %v113
    %117 = vrot.lane.b32.xlu0 %v115, 64
    %v118 = vpop.permute.xlu0 %117
    %v120 = vadd.f32 %v60, %v118
    %v121 = vtanh.pop %v120
    %v122 = vsub.f32 1.0, %v104
    %124 = vrot.lane.b32.xlu0 %v121, 96
    %v125 = vpop.permute.xlu0 %124
    %v127 = vmul.f32 %v122, %v125
    %128 = vrot.lane.b32.xlu0 %v57, 32
    %v129 = vpop.permute.xlu0 %128
    %v131 = vmul.f32 %v104, %v129
    %v132 = vadd.f32 %v127, %v131
    %134 = vrot.lane.b32.xlu0 %v132, 96
    %v135 = vpop.permute.xlu0 %134
    %138 = vrot.lane.b32.xlu0 %v59, 32
    %v139 = vpop.permute.xlu0 %138
    %v141 = vsel %vm61, %v135, %v139
    %vm142 = vcmask 523264
    %v144 = vsel %vm142, %v141, 0
    %146 = vmatpush.msra.mxu0 0.0
    %147 = vmatpush.msra.mxu0 0.0
    %148 = vmatpush.msra.mxu0 0.0
    %149 = vmatpush.msra.mxu0 0.0
    %150 = vmatpush.msra.mxu0 0.0
    %151 = vmatpush.msra.mxu0 0.0
    %152 = vmatpush.msra.mxu0 0.0
    %153 = vmatpush.msra.mxu0 0.0
    %154 = vmatpush.msra.mxu0 %v53
    %155 = vmatpush.msra.mxu0 %v52
    %156 = vmatpush.msra.mxu0 %v51
    %157 = vmatpush.msra.mxu0 %v50
    %158 = vmatpush.msra.mxu0 %v49
    %159 = vmatpush.msra.mxu0 %v48
    %160 = vmatpush.msra.mxu0 %v47
    %161 = vmatpush.msra.mxu0 %v46
    %162 = vmatmul.f32.gmra.mxu0 %v144
    %v163 = vpop.f32.mrf.mxu0
    %v164 = vadd.f32 0.0, %v163
    %165 = vdwg.mxu0
    %v167 = vperm.slane %v54, 0
    %v169 = vadd.f32 %v164, %v167
    %v170 = vxor.u32 %v169, 2147483648
    %v171 = vmul.f32 %v170, 1.442695
    %v172 = vpow.pop %v171
    %v173 = vadd.f32 %v172, 1.0
    %v174 = vrcp.pop %v173
    %v175 = vmul.f32 %v173, %v174
    %v176 = vsub.f32 1.0, %v175
    %v177 = vmul.f32 %v174, %v176
    %v178 = vadd.f32 %v174, %v177
    %vm179 = vweird.f32 %v173
    %vm180 = vweird.f32 %v174
    %vm181 = vmor %vm179, %vm180
    %v182 = vsel %vm181, %v174, %v178
    %v183 = vand.u32 2147483647, %v173
    %vm184 = vcmp.eq.f32.partialorder %v183, 8.507059e+37
    %v185 = vand.u32 %v173, 2147483648
    %v186 = vor.u32 1.1754944e-38, %v185
    %v187 = vsel %vm184, %v186, %v182
    %v188 = vmul.f32 1.0, %v187
    %v190 = vperm.slane %v55, 0
    %191 = vrot.lane.b32.xlu0 %v190, 64
    %v192 = vpop.permute.xlu0 %191
    %v194 = vadd.f32 %v164, %v192
    %v196 = vperm.slane %v56, 0
    %197 = vrot.lane.b32.xlu0 %v196, 96
    %v198 = vpop.permute.xlu0 %197
    %v200 = vadd.f32 %v164, %v198
    %202 = vrot.lane.b32.xlu0 %v200, 32
    %v203 = vpop.permute.xlu0 %202
    %v205 = vmul.f32 %v188, %v203
    %207 = vrot.lane.b32.xlu0 %v205, 64
    %v208 = vpop.permute.xlu0 %207
    %v210 = vadd.f32 %v194, %v208
    %v211 = vtanh.pop %v210
    %v212 = vsub.f32 1.0, %v188
    %214 = vrot.lane.b32.xlu0 %v211, 96
    %v215 = vpop.permute.xlu0 %214
    %v217 = vmul.f32 %v212, %v215
    %v218 = vmul.f32 %v188, %v139
    %v219 = vadd.f32 %v217, %v218
    %221 = vrot.lane.b32.xlu0 %v219, 96
    %v222 = vpop.permute.xlu0 %221
    %vm224 = vcmask 254976
    %225 = vst.msk [vmem:[%s8] sm:$0x3] %vm224, %v222
    %s226 = scalar_lea.vmem %s0, 2
    %v227 = vld [vmem:[%s226] sm:$0x3]
    %v228 = vsel %vm61, %v135, 0
    %230 = vmatpush.msra.mxu0 0.0
    %231 = vmatpush.msra.mxu0 0.0
    %232 = vmatpush.msra.mxu0 0.0
    %233 = vmatpush.msra.mxu0 0.0
    %234 = vmatpush.msra.mxu0 0.0
    %235 = vmatpush.msra.mxu0 0.0
    %236 = vmatpush.msra.mxu0 0.0
    %237 = vmatpush.msra.mxu0 0.0
    %238 = vmatpush.msra.mxu0 0.0
    %239 = vmatpush.msra.mxu0 0.0
    %240 = vmatpush.msra.mxu0 0.0
    %241 = vmatpush.msra.mxu0 0.0
    %242 = vmatpush.msra.mxu0 %v44
    %243 = vmatpush.msra.mxu0 %v43
    %244 = vmatpush.msra.mxu0 %v42
    %245 = vmatpush.msra.mxu0 %v41
    %246 = vmatmul.f32.gmra.mxu0 %v228
    %v247 = vpop.f32.mrf.mxu0
    %v248 = vadd.f32 0.0, %v247
    %249 = vdwg.mxu0
    %v250 = vadd.f32 %v227, %v248
    %v251 = vxor.u32 %v250, 2147483648
    %v252 = vmul.f32 %v251, 1.442695
    %v253 = vpow.pop %v252
    %v254 = vadd.f32 %v253, 1.0
    %v255 = vrcp.pop %v254
    %v256 = vmul.f32 %v254, %v255
    %v257 = vsub.f32 1.0, %v256
    %v258 = vmul.f32 %v255, %v257
    %v259 = vadd.f32 %v255, %v258
    %vm260 = vweird.f32 %v254
    %vm261 = vweird.f32 %v255
    %vm262 = vmor %vm260, %vm261
    %v263 = vsel %vm262, %v255, %v259
    %v264 = vand.u32 2147483647, %v254
    %vm265 = vcmp.eq.f32.partialorder %v264, 8.507059e+37
    %v266 = vand.u32 %v254, 2147483648
    %v267 = vor.u32 1.1754944e-38, %v266
    %v268 = vsel %vm265, %v267, %v263
    %v269 = vmul.f32 1.0, %v268
    %v270 = vadd.f32 %v248, %v108
    %272 = vrot.lane.b32.xlu0 %v270, 64
    %v273 = vpop.permute.xlu0 %272
    %v275 = vmul.f32 %v269, %v273
    %277 = vrot.lane.b32.xlu0 %v275, 64
    %v278 = vpop.permute.xlu0 %277
    %v280 = vadd.f32 %v227, %v278
    %v281 = vtanh.pop %v280
    %v282 = vsub.f32 1.0, %v269
    %284 = vrot.lane.b32.xlu0 %v281, 96
    %v285 = vpop.permute.xlu0 %284
    %v287 = vmul.f32 %v282, %v285
    %v288 = vmul.f32 %v269, %v132
    %v289 = vadd.f32 %v287, %v288
    %291 = vrot.lane.b32.xlu0 %v289, 96
    %v292 = vpop.permute.xlu0 %291
    %v294 = vsel %vm61, %v292, %v219
    %v296 = vsel %vm142, %v294, 0
    %298 = vmatpush.msra.mxu0 0.0
    %299 = vmatpush.msra.mxu0 0.0
    %300 = vmatpush.msra.mxu0 0.0
    %301 = vmatpush.msra.mxu0 0.0
    %302 = vmatpush.msra.mxu0 0.0
    %303 = vmatpush.msra.mxu0 0.0
    %304 = vmatpush.msra.mxu0 0.0
    %305 = vmatpush.msra.mxu0 0.0
    %306 = vmatpush.msra.mxu0 %v53
    %307 = vmatpush.msra.mxu0 %v52
    %308 = vmatpush.msra.mxu0 %v51
    %309 = vmatpush.msra.mxu0 %v50
    %310 = vmatpush.msra.mxu0 %v49
    %311 = vmatpush.msra.mxu0 %v48
    %312 = vmatpush.msra.mxu0 %v47
    %313 = vmatpush.msra.mxu0 %v46
    %314 = vmatmul.f32.gmra.mxu0 %v296
    %v315 = vpop.f32.mrf.mxu0
    %v316 = vadd.f32 0.0, %v315
    %317 = vdwg.mxu0
    %v318 = vadd.f32 %v316, %v167
    %v319 = vxor.u32 %v318, 2147483648
    %v320 = vmul.f32 %v319, 1.442695
    %v321 = vpow.pop %v320
    %v322 = vadd.f32 %v321, 1.0
    %v323 = vrcp.pop %v322
    %v324 = vmul.f32 %v322, %v323
    %v325 = vsub.f32 1.0, %v324
    %v326 = vmul.f32 %v323, %v325
    %v327 = vadd.f32 %v323, %v326
    %vm328 = vweird.f32 %v322
    %vm329 = vweird.f32 %v323
    %vm330 = vmor %vm328, %vm329
    %v331 = vsel %vm330, %v323, %v327
    %v332 = vand.u32 2147483647, %v322
    %vm333 = vcmp.eq.f32.partialorder %v332, 8.507059e+37
    %v334 = vand.u32 %v322, 2147483648
    %v335 = vor.u32 1.1754944e-38, %v334
    %v336 = vsel %vm333, %v335, %v331
    %v337 = vmul.f32 1.0, %v336
    %v338 = vadd.f32 %v316, %v192
    %v339 = vadd.f32 %v316, %v198
    %341 = vrot.lane.b32.xlu0 %v339, 32
    %v342 = vpop.permute.xlu0 %341
    %v344 = vmul.f32 %v337, %v342
    %346 = vrot.lane.b32.xlu0 %v344, 64
    %v347 = vpop.permute.xlu0 %346
    %v349 = vadd.f32 %v338, %v347
    %v350 = vtanh.pop %v349
    %v351 = vsub.f32 1.0, %v337
    %353 = vrot.lane.b32.xlu0 %v350, 96
    %v354 = vpop.permute.xlu0 %353
    %v356 = vmul.f32 %v351, %v354
    %v357 = vmul.f32 %v337, %v219
    %v358 = vadd.f32 %v356, %v357
    %360 = vrot.lane.b32.xlu0 %v358, 96
    %v361 = vpop.permute.xlu0 %360
    %s363 = scalar_lea.vmem %s8, 2
    %364 = vst.msk [vmem:[%s363] sm:$0x3] %vm224, %v361
    %s365 = scalar_lea.vmem %s0, 4
    %v366 = vld [vmem:[%s365] sm:$0x3]
    %v367 = vsel %vm61, %v292, 0
    %369 = vmatpush.msra.mxu0 0.0
    %370 = vmatpush.msra.mxu0 0.0
    %371 = vmatpush.msra.mxu0 0.0
    %372 = vmatpush.msra.mxu0 0.0
    %373 = vmatpush.msra.mxu0 0.0
    %374 = vmatpush.msra.mxu0 0.0
    %375 = vmatpush.msra.mxu0 0.0
    %376 = vmatpush.msra.mxu0 0.0
    %377 = vmatpush.msra.mxu0 0.0
    %378 = vmatpush.msra.mxu0 0.0
    %379 = vmatpush.msra.mxu0 0.0
    %380 = vmatpush.msra.mxu0 0.0
    %381 = vmatpush.msra.mxu0 %v44
    %382 = vmatpush.msra.mxu0 %v43
    %383 = vmatpush.msra.mxu0 %v42
    %384 = vmatpush.msra.mxu0 %v41
    %385 = vmatmul.f32.gmra.mxu0 %v367
    %v386 = vpop.f32.mrf.mxu0
    %v387 = vadd.f32 0.0, %v386
    %388 = vdwg.mxu0
    %v389 = vadd.f32 %v366, %v387
    %v390 = vxor.u32 %v389, 2147483648
    %v391 = vmul.f32 %v390, 1.442695
    %v392 = vpow.pop %v391
    %v393 = vadd.f32 %v392, 1.0
    %v394 = vrcp.pop %v393
    %v395 = vmul.f32 %v393, %v394
    %v396 = vsub.f32 1.0, %v395
    %v397 = vmul.f32 %v394, %v396
    %v398 = vadd.f32 %v394, %v397
    %vm399 = vweird.f32 %v393
    %vm400 = vweird.f32 %v394
    %vm401 = vmor %vm399, %vm400
    %v402 = vsel %vm401, %v394, %v398
    %v403 = vand.u32 2147483647, %v393
    %vm404 = vcmp.eq.f32.partialorder %v403, 8.507059e+37
    %v405 = vand.u32 %v393, 2147483648
    %v406 = vor.u32 1.1754944e-38, %v405
    %v407 = vsel %vm404, %v406, %v402
    %v408 = vmul.f32 1.0, %v407
    %v409 = vadd.f32 %v387, %v108
    %411 = vrot.lane.b32.xlu0 %v409, 64
    %v412 = vpop.permute.xlu0 %411
    %v414 = vmul.f32 %v408, %v412
    %416 = vrot.lane.b32.xlu0 %v414, 64
    %v417 = vpop.permute.xlu0 %416
    %v419 = vadd.f32 %v366, %v417
    %v420 = vtanh.pop %v419
    %v421 = vsub.f32 1.0, %v408
    %423 = vrot.lane.b32.xlu0 %v420, 96
    %v424 = vpop.permute.xlu0 %423
    %v426 = vmul.f32 %v421, %v424
    %v427 = vmul.f32 %v408, %v289
    %v428 = vadd.f32 %v426, %v427
    %430 = vrot.lane.b32.xlu0 %v428, 96
    %v431 = vpop.permute.xlu0 %430
    %v433 = vsel %vm61, %v431, %v358
    %v435 = vsel %vm142, %v433, 0
    %437 = vmatpush.msra.mxu0 0.0
    %438 = vmatpush.msra.mxu0 0.0
    %439 = vmatpush.msra.mxu0 0.0
    %440 = vmatpush.msra.mxu0 0.0
    %441 = vmatpush.msra.mxu0 0.0
    %442 = vmatpush.msra.mxu0 0.0
    %443 = vmatpush.msra.mxu0 0.0
    %444 = vmatpush.msra.mxu0 0.0
    %445 = vmatpush.msra.mxu0 %v53
    %446 = vmatpush.msra.mxu0 %v52
    %447 = vmatpush.msra.mxu0 %v51
    %448 = vmatpush.msra.mxu0 %v50
    %449 = vmatpush.msra.mxu0 %v49
    %450 = vmatpush.msra.mxu0 %v48
    %451 = vmatpush.msra.mxu0 %v47
    %452 = vmatpush.msra.mxu0 %v46
    %453 = vmatmul.f32.gmra.mxu0 %v435
    %v454 = vpop.f32.mrf.mxu0
    %v455 = vadd.f32 0.0, %v454
    %456 = vdwg.mxu0
    %v457 = vadd.f32 %v455, %v167
    %v458 = vxor.u32 %v457, 2147483648
    %v459 = vmul.f32 %v458, 1.442695
    %v460 = vpow.pop %v459
    %v461 = vadd.f32 %v460, 1.0
    %v462 = vrcp.pop %v461
    %v463 = vmul.f32 %v461, %v462
    %v464 = vsub.f32 1.0, %v463
    %v465 = vmul.f32 %v462, %v464
    %v466 = vadd.f32 %v462, %v465
    %vm467 = vweird.f32 %v461
    %vm468 = vweird.f32 %v462
    %vm469 = vmor %vm467, %vm468
    %v470 = vsel %vm469, %v462, %v466
    %v471 = vand.u32 2147483647, %v461
    %vm472 = vcmp.eq.f32.partialorder %v471, 8.507059e+37
    %v473 = vand.u32 %v461, 2147483648
    %v474 = vor.u32 1.1754944e-38, %v473
    %v475 = vsel %vm472, %v474, %v470
    %v476 = vmul.f32 1.0, %v475
    %v477 = vadd.f32 %v455, %v192
    %v478 = vadd.f32 %v455, %v198
    %480 = vrot.lane.b32.xlu0 %v478, 32
    %v481 = vpop.permute.xlu0 %480
    %v483 = vmul.f32 %v476, %v481
    %485 = vrot.lane.b32.xlu0 %v483, 64
    %v486 = vpop.permute.xlu0 %485
    %v488 = vadd.f32 %v477, %v486
    %v489 = vtanh.pop %v488
    %v490 = vsub.f32 1.0, %v476
    %492 = vrot.lane.b32.xlu0 %v489, 96
    %v493 = vpop.permute.xlu0 %492
    %v495 = vmul.f32 %v490, %v493
    %v496 = vmul.f32 %v476, %v358
    %v497 = vadd.f32 %v495, %v496
    %499 = vrot.lane.b32.xlu0 %v497, 96
    %v500 = vpop.permute.xlu0 %499
    %s502 = scalar_lea.vmem %s8, 4
    %503 = vst.msk [vmem:[%s502] sm:$0x3] %vm224, %v500
    %s504 = scalar_lea.vmem %s0, 6
    %v505 = vld [vmem:[%s504] sm:$0x3]
    %v506 = vsel %vm61, %v431, 0
    %508 = vmatpush.msra.mxu0 0.0
    %509 = vmatpush.msra.mxu0 0.0
    %510 = vmatpush.msra.mxu0 0.0
    %511 = vmatpush.msra.mxu0 0.0
    %512 = vmatpush.msra.mxu0 0.0
    %513 = vmatpush.msra.mxu0 0.0
    %514 = vmatpush.msra.mxu0 0.0
    %515 = vmatpush.msra.mxu0 0.0
    %516 = vmatpush.msra.mxu0 0.0
    %517 = vmatpush.msra.mxu0 0.0
    %518 = vmatpush.msra.mxu0 0.0
    %519 = vmatpush.msra.mxu0 0.0
    %520 = vmatpush.msra.mxu0 %v44
    %521 = vmatpush.msra.mxu0 %v43
    %522 = vmatpush.msra.mxu0 %v42
    %523 = vmatpush.msra.mxu0 %v41
    %524 = vmatmul.f32.gmra.mxu0 %v506
    %v525 = vpop.f32.mrf.mxu0
    %v526 = vadd.f32 0.0, %v525
    %527 = vdwg.mxu0
    %v528 = vadd.f32 %v505, %v526
    %v529 = vxor.u32 %v528, 2147483648
    %v530 = vmul.f32 %v529, 1.442695
    %v531 = vpow.pop %v530
    %v532 = vadd.f32 %v531, 1.0
    %v533 = vrcp.pop %v532
    %v534 = vmul.f32 %v532, %v533
    %v535 = vsub.f32 1.0, %v534
    %v536 = vmul.f32 %v533, %v535
    %v537 = vadd.f32 %v533, %v536
    %vm538 = vweird.f32 %v532
    %vm539 = vweird.f32 %v533
    %vm540 = vmor %vm538, %vm539
    %v541 = vsel %vm540, %v533, %v537
    %v542 = vand.u32 2147483647, %v532
    %vm543 = vcmp.eq.f32.partialorder %v542, 8.507059e+37
    %v544 = vand.u32 %v532, 2147483648
    %v545 = vor.u32 1.1754944e-38, %v544
    %v546 = vsel %vm543, %v545, %v541
    %v547 = vmul.f32 1.0, %v546
    %v548 = vadd.f32 %v526, %v108
    %550 = vrot.lane.b32.xlu0 %v548, 64
    %v551 = vpop.permute.xlu0 %550
    %v553 = vmul.f32 %v547, %v551
    %555 = vrot.lane.b32.xlu0 %v553, 64
    %v556 = vpop.permute.xlu0 %555
    %v558 = vadd.f32 %v505, %v556
    %v559 = vtanh.pop %v558
    %v560 = vsub.f32 1.0, %v547
    %562 = vrot.lane.b32.xlu0 %v559, 96
    %v563 = vpop.permute.xlu0 %562
    %v565 = vmul.f32 %v560, %v563
    %v566 = vmul.f32 %v547, %v428
    %v567 = vadd.f32 %v565, %v566
    %569 = vrot.lane.b32.xlu0 %v567, 96
    %v570 = vpop.permute.xlu0 %569
    %v572 = vsel %vm61, %v570, %v497
    %v574 = vsel %vm142, %v572, 0
    %576 = vmatpush.msra.mxu0 0.0
    %577 = vmatpush.msra.mxu0 0.0
    %578 = vmatpush.msra.mxu0 0.0
    %579 = vmatpush.msra.mxu0 0.0
    %580 = vmatpush.msra.mxu0 0.0
    %581 = vmatpush.msra.mxu0 0.0
    %582 = vmatpush.msra.mxu0 0.0
    %583 = vmatpush.msra.mxu0 0.0
    %584 = vmatpush.msra.mxu0 %v53
    %585 = vmatpush.msra.mxu0 %v52
    %586 = vmatpush.msra.mxu0 %v51
    %587 = vmatpush.msra.mxu0 %v50
    %588 = vmatpush.msra.mxu0 %v49
    %589 = vmatpush.msra.mxu0 %v48
    %590 = vmatpush.msra.mxu0 %v47
    %591 = vmatpush.msra.mxu0 %v46
    %592 = vmatmul.f32.gmra.mxu0 %v574
    %v593 = vpop.f32.mrf.mxu0
    %v594 = vadd.f32 0.0, %v593
    %595 = vdwg.mxu0
    %v596 = vadd.f32 %v594, %v167
    %v597 = vxor.u32 %v596, 2147483648
    %v598 = vmul.f32 %v597, 1.442695
    %v599 = vpow.pop %v598
    %v600 = vadd.f32 %v599, 1.0
    %v601 = vrcp.pop %v600
    %v602 = vmul.f32 %v600, %v601
    %v603 = vsub.f32 1.0, %v602
    %v604 = vmul.f32 %v601, %v603
    %v605 = vadd.f32 %v601, %v604
    %vm606 = vweird.f32 %v600
    %vm607 = vweird.f32 %v601
    %vm608 = vmor %vm606, %vm607
    %v609 = vsel %vm608, %v601, %v605
    %v610 = vand.u32 2147483647, %v600
    %vm611 = vcmp.eq.f32.partialorder %v610, 8.507059e+37
    %v612 = vand.u32 %v600, 2147483648
    %v613 = vor.u32 1.1754944e-38, %v612
    %v614 = vsel %vm611, %v613, %v609
    %v615 = vmul.f32 1.0, %v614
    %v616 = vadd.f32 %v594, %v192
    %v617 = vadd.f32 %v594, %v198
    %619 = vrot.lane.b32.xlu0 %v617, 32
    %v620 = vpop.permute.xlu0 %619
    %v622 = vmul.f32 %v615, %v620
    %624 = vrot.lane.b32.xlu0 %v622, 64
    %v625 = vpop.permute.xlu0 %624
    %v627 = vadd.f32 %v616, %v625
    %v628 = vtanh.pop %v627
    %v629 = vsub.f32 1.0, %v615
    %631 = vrot.lane.b32.xlu0 %v628, 96
    %v632 = vpop.permute.xlu0 %631
    %v634 = vmul.f32 %v629, %v632
    %v635 = vmul.f32 %v615, %v497
    %v636 = vadd.f32 %v634, %v635
    %638 = vrot.lane.b32.xlu0 %v636, 96
    %v639 = vpop.permute.xlu0 %638
    %s641 = scalar_lea.vmem %s8, 6
    %642 = vst.msk [vmem:[%s641] sm:$0x3] %vm224, %v639
    %s643 = scalar_lea.vmem %s0, 8
    %v644 = vld [vmem:[%s643] sm:$0x3]
    %v645 = vsel %vm61, %v570, 0
    %647 = vmatpush.msra.mxu0 0.0
    %648 = vmatpush.msra.mxu0 0.0
    %649 = vmatpush.msra.mxu0 0.0
    %650 = vmatpush.msra.mxu0 0.0
    %651 = vmatpush.msra.mxu0 0.0
    %652 = vmatpush.msra.mxu0 0.0
    %653 = vmatpush.msra.mxu0 0.0
    %654 = vmatpush.msra.mxu0 0.0
    %655 = vmatpush.msra.mxu0 0.0
    %656 = vmatpush.msra.mxu0 0.0
    %657 = vmatpush.msra.mxu0 0.0
    %658 = vmatpush.msra.mxu0 0.0
    %659 = vmatpush.msra.mxu0 %v44
    %660 = vmatpush.msra.mxu0 %v43
    %661 = vmatpush.msra.mxu0 %v42
    %662 = vmatpush.msra.mxu0 %v41
    %663 = vmatmul.f32.gmra.mxu0 %v645
    %v664 = vpop.f32.mrf.mxu0
    %v665 = vadd.f32 0.0, %v664
    %666 = vdwg.mxu0
    %v667 = vadd.f32 %v644, %v665
    %v668 = vxor.u32 %v667, 2147483648
    %v669 = vmul.f32 %v668, 1.442695
    %v670 = vpow.pop %v669
    %v671 = vadd.f32 %v670, 1.0
    %v672 = vrcp.pop %v671
    %v673 = vmul.f32 %v671, %v672
    %v674 = vsub.f32 1.0, %v673
    %v675 = vmul.f32 %v672, %v674
    %v676 = vadd.f32 %v672, %v675
    %vm677 = vweird.f32 %v671
    %vm678 = vweird.f32 %v672
    %vm679 = vmor %vm677, %vm678
    %v680 = vsel %vm679, %v672, %v676
    %v681 = vand.u32 2147483647, %v671
    %vm682 = vcmp.eq.f32.partialorder %v681, 8.507059e+37
    %v683 = vand.u32 %v671, 2147483648
    %v684 = vor.u32 1.1754944e-38, %v683
    %v685 = vsel %vm682, %v684, %v680
    %v686 = vmul.f32 1.0, %v685
    %v687 = vadd.f32 %v665, %v108
    %689 = vrot.lane.b32.xlu0 %v687, 64
    %v690 = vpop.permute.xlu0 %689
    %v692 = vmul.f32 %v686, %v690
    %694 = vrot.lane.b32.xlu0 %v692, 64
    %v695 = vpop.permute.xlu0 %694
    %v697 = vadd.f32 %v644, %v695
    %v698 = vtanh.pop %v697
    %v699 = vsub.f32 1.0, %v686
    %701 = vrot.lane.b32.xlu0 %v698, 96
    %v702 = vpop.permute.xlu0 %701
    %v704 = vmul.f32 %v699, %v702
    %v705 = vmul.f32 %v686, %v567
    %v706 = vadd.f32 %v704, %v705
    %708 = vrot.lane.b32.xlu0 %v706, 96
    %v709 = vpop.permute.xlu0 %708
    %v711 = vsel %vm61, %v709, %v636
    %v713 = vsel %vm142, %v711, 0
    %715 = vmatpush.msra.mxu0 0.0
    %716 = vmatpush.msra.mxu0 0.0
    %717 = vmatpush.msra.mxu0 0.0
    %718 = vmatpush.msra.mxu0 0.0
    %719 = vmatpush.msra.mxu0 0.0
    %720 = vmatpush.msra.mxu0 0.0
    %721 = vmatpush.msra.mxu0 0.0
    %722 = vmatpush.msra.mxu0 0.0
    %723 = vmatpush.msra.mxu0 %v53
    %724 = vmatpush.msra.mxu0 %v52
    %725 = vmatpush.msra.mxu0 %v51
    %726 = vmatpush.msra.mxu0 %v50
    %727 = vmatpush.msra.mxu0 %v49
    %728 = vmatpush.msra.mxu0 %v48
    %729 = vmatpush.msra.mxu0 %v47
    %730 = vmatpush.msra.mxu0 %v46
    %731 = vmatmul.f32.gmra.mxu0 %v713
    %v732 = vpop.f32.mrf.mxu0
    %v733 = vadd.f32 0.0, %v732
    %734 = vdwg.mxu0
    %v735 = vadd.f32 %v733, %v167
    %v736 = vxor.u32 %v735, 2147483648
    %v737 = vmul.f32 %v736, 1.442695
    %v738 = vpow.pop %v737
    %v739 = vadd.f32 %v738, 1.0
    %v740 = vrcp.pop %v739
    %v741 = vmul.f32 %v739, %v740
    %v742 = vsub.f32 1.0, %v741
    %v743 = vmul.f32 %v740, %v742
    %v744 = vadd.f32 %v740, %v743
    %vm745 = vweird.f32 %v739
    %vm746 = vweird.f32 %v740
    %vm747 = vmor %vm745, %vm746
    %v748 = vsel %vm747, %v740, %v744
    %v749 = vand.u32 2147483647, %v739
    %vm750 = vcmp.eq.f32.partialorder %v749, 8.507059e+37
    %v751 = vand.u32 %v739, 2147483648
    %v752 = vor.u32 1.1754944e-38, %v751
    %v753 = vsel %vm750, %v752, %v748
    %v754 = vmul.f32 1.0, %v753
    %v755 = vadd.f32 %v733, %v192
    %v756 = vadd.f32 %v733, %v198
    %758 = vrot.lane.b32.xlu0 %v756, 32
    %v759 = vpop.permute.xlu0 %758
    %v761 = vmul.f32 %v754, %v759
    %763 = vrot.lane.b32.xlu0 %v761, 64
    %v764 = vpop.permute.xlu0 %763
    %v766 = vadd.f32 %v755, %v764
    %v767 = vtanh.pop %v766
    %v768 = vsub.f32 1.0, %v754
    %770 = vrot.lane.b32.xlu0 %v767, 96
    %v771 = vpop.permute.xlu0 %770
    %v773 = vmul.f32 %v768, %v771
    %v774 = vmul.f32 %v754, %v636
    %v775 = vadd.f32 %v773, %v774
    %777 = vrot.lane.b32.xlu0 %v775, 96
    %v778 = vpop.permute.xlu0 %777
    %s780 = scalar_lea.vmem %s8, 8
    %781 = vst.msk [vmem:[%s780] sm:$0x3] %vm224, %v778
    %s782 = scalar_lea.vmem %s0, 10
    %v783 = vld [vmem:[%s782] sm:$0x3]
    %v784 = vsel %vm61, %v709, 0
    %786 = vmatpush.msra.mxu0 0.0
    %787 = vmatpush.msra.mxu0 0.0
    %788 = vmatpush.msra.mxu0 0.0
    %789 = vmatpush.msra.mxu0 0.0
    %790 = vmatpush.msra.mxu0 0.0
    %791 = vmatpush.msra.mxu0 0.0
    %792 = vmatpush.msra.mxu0 0.0
    %793 = vmatpush.msra.mxu0 0.0
    %794 = vmatpush.msra.mxu0 0.0
    %795 = vmatpush.msra.mxu0 0.0
    %796 = vmatpush.msra.mxu0 0.0
    %797 = vmatpush.msra.mxu0 0.0
    %798 = vmatpush.msra.mxu0 %v44
    %799 = vmatpush.msra.mxu0 %v43
    %800 = vmatpush.msra.mxu0 %v42
    %801 = vmatpush.msra.mxu0 %v41
    %802 = vmatmul.f32.gmra.mxu0 %v784
    %v803 = vpop.f32.mrf.mxu0
    %v804 = vadd.f32 0.0, %v803
    %805 = vdwg.mxu0
    %v806 = vadd.f32 %v783, %v804
    %v807 = vxor.u32 %v806, 2147483648
    %v808 = vmul.f32 %v807, 1.442695
    %v809 = vpow.pop %v808
    %v810 = vadd.f32 %v809, 1.0
    %v811 = vrcp.pop %v810
    %v812 = vmul.f32 %v810, %v811
    %v813 = vsub.f32 1.0, %v812
    %v814 = vmul.f32 %v811, %v813
    %v815 = vadd.f32 %v811, %v814
    %vm816 = vweird.f32 %v810
    %vm817 = vweird.f32 %v811
    %vm818 = vmor %vm816, %vm817
    %v819 = vsel %vm818, %v811, %v815
    %v820 = vand.u32 2147483647, %v810
    %vm821 = vcmp.eq.f32.partialorder %v820, 8.507059e+37
    %v822 = vand.u32 %v810, 2147483648
    %v823 = vor.u32 1.1754944e-38, %v822
    %v824 = vsel %vm821, %v823, %v819
    %v825 = vmul.f32 1.0, %v824
    %v826 = vadd.f32 %v804, %v108
    %828 = vrot.lane.b32.xlu0 %v826, 64
    %v829 = vpop.permute.xlu0 %828
    %v831 = vmul.f32 %v825, %v829
    %833 = vrot.lane.b32.xlu0 %v831, 64
    %v834 = vpop.permute.xlu0 %833
    %v836 = vadd.f32 %v783, %v834
    %v837 = vtanh.pop %v836
    %v838 = vsub.f32 1.0, %v825
    %840 = vrot.lane.b32.xlu0 %v837, 96
    %v841 = vpop.permute.xlu0 %840
    %v843 = vmul.f32 %v838, %v841
    %v844 = vmul.f32 %v825, %v706
    %v845 = vadd.f32 %v843, %v844
    %847 = vrot.lane.b32.xlu0 %v845, 96
    %v848 = vpop.permute.xlu0 %847
    %v850 = vsel %vm61, %v848, %v775
    %v852 = vsel %vm142, %v850, 0
    %854 = vmatpush.msra.mxu0 0.0
    %855 = vmatpush.msra.mxu0 0.0
    %856 = vmatpush.msra.mxu0 0.0
    %857 = vmatpush.msra.mxu0 0.0
    %858 = vmatpush.msra.mxu0 0.0
    %859 = vmatpush.msra.mxu0 0.0
    %860 = vmatpush.msra.mxu0 0.0
    %861 = vmatpush.msra.mxu0 0.0
    %862 = vmatpush.msra.mxu0 %v53
    %863 = vmatpush.msra.mxu0 %v52
    %864 = vmatpush.msra.mxu0 %v51
    %865 = vmatpush.msra.mxu0 %v50
    %866 = vmatpush.msra.mxu0 %v49
    %867 = vmatpush.msra.mxu0 %v48
    %868 = vmatpush.msra.mxu0 %v47
    %869 = vmatpush.msra.mxu0 %v46
    %870 = vmatmul.f32.gmra.mxu0 %v852
    %v871 = vpop.f32.mrf.mxu0
    %v872 = vadd.f32 0.0, %v871
    %873 = vdwg.mxu0
    %v874 = vadd.f32 %v872, %v167
    %v875 = vxor.u32 %v874, 2147483648
    %v876 = vmul.f32 %v875, 1.442695
    %v877 = vpow.pop %v876
    %v878 = vadd.f32 %v877, 1.0
    %v879 = vrcp.pop %v878
    %v880 = vmul.f32 %v878, %v879
    %v881 = vsub.f32 1.0, %v880
    %v882 = vmul.f32 %v879, %v881
    %v883 = vadd.f32 %v879, %v882
    %vm884 = vweird.f32 %v878
    %vm885 = vweird.f32 %v879
    %vm886 = vmor %vm884, %vm885
    %v887 = vsel %vm886, %v879, %v883
    %v888 = vand.u32 2147483647, %v878
    %vm889 = vcmp.eq.f32.partialorder %v888, 8.507059e+37
    %v890 = vand.u32 %v878, 2147483648
    %v891 = vor.u32 1.1754944e-38, %v890
    %v892 = vsel %vm889, %v891, %v887
    %v893 = vmul.f32 1.0, %v892
    %v894 = vadd.f32 %v872, %v192
    %v895 = vadd.f32 %v872, %v198
    %897 = vrot.lane.b32.xlu0 %v895, 32
    %v898 = vpop.permute.xlu0 %897
    %v900 = vmul.f32 %v893, %v898
    %902 = vrot.lane.b32.xlu0 %v900, 64
    %v903 = vpop.permute.xlu0 %902
    %v905 = vadd.f32 %v894, %v903
    %v906 = vtanh.pop %v905
    %v907 = vsub.f32 1.0, %v893
    %909 = vrot.lane.b32.xlu0 %v906, 96
    %v910 = vpop.permute.xlu0 %909
    %v912 = vmul.f32 %v907, %v910
    %v913 = vmul.f32 %v893, %v775
    %v914 = vadd.f32 %v912, %v913
    %916 = vrot.lane.b32.xlu0 %v914, 96
    %v917 = vpop.permute.xlu0 %916
    %s919 = scalar_lea.vmem %s8, 10
    %920 = vst.msk [vmem:[%s919] sm:$0x3] %vm224, %v917
    %s921 = scalar_lea.vmem %s0, 12
    %v922 = vld [vmem:[%s921] sm:$0x3]
    %v923 = vsel %vm61, %v848, 0
    %925 = vmatpush.msra.mxu0 0.0
    %926 = vmatpush.msra.mxu0 0.0
    %927 = vmatpush.msra.mxu0 0.0
    %928 = vmatpush.msra.mxu0 0.0
    %929 = vmatpush.msra.mxu0 0.0
    %930 = vmatpush.msra.mxu0 0.0
    %931 = vmatpush.msra.mxu0 0.0
    %932 = vmatpush.msra.mxu0 0.0
    %933 = vmatpush.msra.mxu0 0.0
    %934 = vmatpush.msra.mxu0 0.0
    %935 = vmatpush.msra.mxu0 0.0
    %936 = vmatpush.msra.mxu0 0.0
    %937 = vmatpush.msra.mxu0 %v44
    %938 = vmatpush.msra.mxu0 %v43
    %939 = vmatpush.msra.mxu0 %v42
    %940 = vmatpush.msra.mxu0 %v41
    %941 = vmatmul.f32.gmra.mxu0 %v923
    %v942 = vpop.f32.mrf.mxu0
    %v943 = vadd.f32 0.0, %v942
    %944 = vdwg.mxu0
    %v945 = vadd.f32 %v922, %v943
    %v946 = vxor.u32 %v945, 2147483648
    %v947 = vmul.f32 %v946, 1.442695
    %v948 = vpow.pop %v947
    %v949 = vadd.f32 %v948, 1.0
    %v950 = vrcp.pop %v949
    %v951 = vmul.f32 %v949, %v950
    %v952 = vsub.f32 1.0, %v951
    %v953 = vmul.f32 %v950, %v952
    %v954 = vadd.f32 %v950, %v953
    %vm955 = vweird.f32 %v949
    %vm956 = vweird.f32 %v950
    %vm957 = vmor %vm955, %vm956
    %v958 = vsel %vm957, %v950, %v954
    %v959 = vand.u32 2147483647, %v949
    %vm960 = vcmp.eq.f32.partialorder %v959, 8.507059e+37
    %v961 = vand.u32 %v949, 2147483648
    %v962 = vor.u32 1.1754944e-38, %v961
    %v963 = vsel %vm960, %v962, %v958
    %v964 = vmul.f32 1.0, %v963
    %v965 = vadd.f32 %v943, %v108
    %967 = vrot.lane.b32.xlu0 %v965, 64
    %v968 = vpop.permute.xlu0 %967
    %v970 = vmul.f32 %v964, %v968
    %972 = vrot.lane.b32.xlu0 %v970, 64
    %v973 = vpop.permute.xlu0 %972
    %v975 = vadd.f32 %v922, %v973
    %v976 = vtanh.pop %v975
    %v977 = vsub.f32 1.0, %v964
    %979 = vrot.lane.b32.xlu0 %v976, 96
    %v980 = vpop.permute.xlu0 %979
    %v982 = vmul.f32 %v977, %v980
    %v983 = vmul.f32 %v964, %v845
    %v984 = vadd.f32 %v982, %v983
    %986 = vrot.lane.b32.xlu0 %v984, 96
    %v987 = vpop.permute.xlu0 %986
    %v989 = vsel %vm61, %v987, %v914
    %v991 = vsel %vm142, %v989, 0
    %993 = vmatpush.msra.mxu0 0.0
    %994 = vmatpush.msra.mxu0 0.0
    %995 = vmatpush.msra.mxu0 0.0
    %996 = vmatpush.msra.mxu0 0.0
    %997 = vmatpush.msra.mxu0 0.0
    %998 = vmatpush.msra.mxu0 0.0
    %999 = vmatpush.msra.mxu0 0.0
    %1000 = vmatpush.msra.mxu0 0.0
    %1001 = vmatpush.msra.mxu0 %v53
    %1002 = vmatpush.msra.mxu0 %v52
    %1003 = vmatpush.msra.mxu0 %v51
    %1004 = vmatpush.msra.mxu0 %v50
    %1005 = vmatpush.msra.mxu0 %v49
    %1006 = vmatpush.msra.mxu0 %v48
    %1007 = vmatpush.msra.mxu0 %v47
    %1008 = vmatpush.msra.mxu0 %v46
    %1009 = vmatmul.f32.gmra.mxu0 %v991
    %v1010 = vpop.f32.mrf.mxu0
    %v1011 = vadd.f32 0.0, %v1010
    %1012 = vdwg.mxu0
    %v1013 = vadd.f32 %v1011, %v167
    %v1014 = vxor.u32 %v1013, 2147483648
    %v1015 = vmul.f32 %v1014, 1.442695
    %v1016 = vpow.pop %v1015
    %v1017 = vadd.f32 %v1016, 1.0
    %v1018 = vrcp.pop %v1017
    %v1019 = vmul.f32 %v1017, %v1018
    %v1020 = vsub.f32 1.0, %v1019
    %v1021 = vmul.f32 %v1018, %v1020
    %v1022 = vadd.f32 %v1018, %v1021
    %vm1023 = vweird.f32 %v1017
    %vm1024 = vweird.f32 %v1018
    %vm1025 = vmor %vm1023, %vm1024
    %v1026 = vsel %vm1025, %v1018, %v1022
    %v1027 = vand.u32 2147483647, %v1017
    %vm1028 = vcmp.eq.f32.partialorder %v1027, 8.507059e+37
    %v1029 = vand.u32 %v1017, 2147483648
    %v1030 = vor.u32 1.1754944e-38, %v1029
    %v1031 = vsel %vm1028, %v1030, %v1026
    %v1032 = vmul.f32 1.0, %v1031
    %v1033 = vadd.f32 %v1011, %v192
    %v1034 = vadd.f32 %v1011, %v198
    %1036 = vrot.lane.b32.xlu0 %v1034, 32
    %v1037 = vpop.permute.xlu0 %1036
    %v1039 = vmul.f32 %v1032, %v1037
    %1041 = vrot.lane.b32.xlu0 %v1039, 64
    %v1042 = vpop.permute.xlu0 %1041
    %v1044 = vadd.f32 %v1033, %v1042
    %v1045 = vtanh.pop %v1044
    %v1046 = vsub.f32 1.0, %v1032
    %1048 = vrot.lane.b32.xlu0 %v1045, 96
    %v1049 = vpop.permute.xlu0 %1048
    %v1051 = vmul.f32 %v1046, %v1049
    %v1052 = vmul.f32 %v1032, %v914
    %v1053 = vadd.f32 %v1051, %v1052
    %1055 = vrot.lane.b32.xlu0 %v1053, 96
    %v1056 = vpop.permute.xlu0 %1055
    %s1058 = scalar_lea.vmem %s8, 12
    %1059 = vst.msk [vmem:[%s1058] sm:$0x3] %vm224, %v1056
    %s1060 = scalar_lea.vmem %s0, 14
    %v1061 = vld [vmem:[%s1060] sm:$0x3]
    %v1062 = vsel %vm61, %v987, 0
    %1064 = vmatpush.msra.mxu0 0.0
    %1065 = vmatpush.msra.mxu0 0.0
    %1066 = vmatpush.msra.mxu0 0.0
    %1067 = vmatpush.msra.mxu0 0.0
    %1068 = vmatpush.msra.mxu0 0.0
    %1069 = vmatpush.msra.mxu0 0.0
    %1070 = vmatpush.msra.mxu0 0.0
    %1071 = vmatpush.msra.mxu0 0.0
    %1072 = vmatpush.msra.mxu0 0.0
    %1073 = vmatpush.msra.mxu0 0.0
    %1074 = vmatpush.msra.mxu0 0.0
    %1075 = vmatpush.msra.mxu0 0.0
    %1076 = vmatpush.msra.mxu0 %v44
    %1077 = vmatpush.msra.mxu0 %v43
    %1078 = vmatpush.msra.mxu0 %v42
    %1079 = vmatpush.msra.mxu0 %v41
    %1080 = vmatmul.f32.gmra.mxu0 %v1062
    %v1081 = vpop.f32.mrf.mxu0
    %v1082 = vadd.f32 0.0, %v1081
    %1083 = vdwg.mxu0
    %v1084 = vadd.f32 %v1061, %v1082
    %v1085 = vxor.u32 %v1084, 2147483648
    %v1086 = vmul.f32 %v1085, 1.442695
    %v1087 = vpow.pop %v1086
    %v1088 = vadd.f32 %v1087, 1.0
    %v1089 = vrcp.pop %v1088
    %v1090 = vmul.f32 %v1088, %v1089
    %v1091 = vsub.f32 1.0, %v1090
    %v1092 = vmul.f32 %v1089, %v1091
    %v1093 = vadd.f32 %v1089, %v1092
    %vm1094 = vweird.f32 %v1088
    %vm1095 = vweird.f32 %v1089
    %vm1096 = vmor %vm1094, %vm1095
    %v1097 = vsel %vm1096, %v1089, %v1093
    %v1098 = vand.u32 2147483647, %v1088
    %vm1099 = vcmp.eq.f32.partialorder %v1098, 8.507059e+37
    %v1100 = vand.u32 %v1088, 2147483648
    %v1101 = vor.u32 1.1754944e-38, %v1100
    %v1102 = vsel %vm1099, %v1101, %v1097
    %v1103 = vmul.f32 1.0, %v1102
    %v1104 = vadd.f32 %v1082, %v108
    %1106 = vrot.lane.b32.xlu0 %v1104, 64
    %v1107 = vpop.permute.xlu0 %1106
    %v1109 = vmul.f32 %v1103, %v1107
    %1111 = vrot.lane.b32.xlu0 %v1109, 64
    %v1112 = vpop.permute.xlu0 %1111
    %v1114 = vadd.f32 %v1061, %v1112
    %v1115 = vtanh.pop %v1114
    %v1116 = vsub.f32 1.0, %v1103
    %1118 = vrot.lane.b32.xlu0 %v1115, 96
    %v1119 = vpop.permute.xlu0 %1118
    %v1121 = vmul.f32 %v1116, %v1119
    %v1122 = vmul.f32 %v1103, %v984
    %v1123 = vadd.f32 %v1121, %v1122
    %1125 = vrot.lane.b32.xlu0 %v1123, 96
    %v1126 = vpop.permute.xlu0 %1125
    %v1128 = vsel %vm61, %v1126, %v1053
    %v1130 = vsel %vm142, %v1128, 0
    %1132 = vmatpush.msra.mxu0 0.0
    %1133 = vmatpush.msra.mxu0 0.0
    %1134 = vmatpush.msra.mxu0 0.0
    %1135 = vmatpush.msra.mxu0 0.0
    %1136 = vmatpush.msra.mxu0 0.0
    %1137 = vmatpush.msra.mxu0 0.0
    %1138 = vmatpush.msra.mxu0 0.0
    %1139 = vmatpush.msra.mxu0 0.0
    %1140 = vmatpush.msra.mxu0 %v53
    %1141 = vmatpush.msra.mxu0 %v52
    %1142 = vmatpush.msra.mxu0 %v51
    %1143 = vmatpush.msra.mxu0 %v50
    %1144 = vmatpush.msra.mxu0 %v49
    %1145 = vmatpush.msra.mxu0 %v48
    %1146 = vmatpush.msra.mxu0 %v47
    %1147 = vmatpush.msra.mxu0 %v46
    %1148 = vmatmul.f32.gmra.mxu0 %v1130
    %v1149 = vpop.f32.mrf.mxu0
    %v1150 = vadd.f32 0.0, %v1149
    %1151 = vdwg.mxu0
    %v1152 = vadd.f32 %v1150, %v167
    %v1153 = vxor.u32 %v1152, 2147483648
    %v1154 = vmul.f32 %v1153, 1.442695
    %v1155 = vpow.pop %v1154
    %v1156 = vadd.f32 %v1155, 1.0
    %v1157 = vrcp.pop %v1156
    %v1158 = vmul.f32 %v1156, %v1157
    %v1159 = vsub.f32 1.0, %v1158
    %v1160 = vmul.f32 %v1157, %v1159
    %v1161 = vadd.f32 %v1157, %v1160
    %vm1162 = vweird.f32 %v1156
    %vm1163 = vweird.f32 %v1157
    %vm1164 = vmor %vm1162, %vm1163
    %v1165 = vsel %vm1164, %v1157, %v1161
    %v1166 = vand.u32 2147483647, %v1156
    %vm1167 = vcmp.eq.f32.partialorder %v1166, 8.507059e+37
    %v1168 = vand.u32 %v1156, 2147483648
    %v1169 = vor.u32 1.1754944e-38, %v1168
    %v1170 = vsel %vm1167, %v1169, %v1165
    %v1171 = vmul.f32 1.0, %v1170
    %v1172 = vadd.f32 %v1150, %v192
    %v1173 = vadd.f32 %v1150, %v198
    %1175 = vrot.lane.b32.xlu0 %v1173, 32
    %v1176 = vpop.permute.xlu0 %1175
    %v1178 = vmul.f32 %v1171, %v1176
    %1180 = vrot.lane.b32.xlu0 %v1178, 64
    %v1181 = vpop.permute.xlu0 %1180
    %v1183 = vadd.f32 %v1172, %v1181
    %v1184 = vtanh.pop %v1183
    %v1185 = vsub.f32 1.0, %v1171
    %1187 = vrot.lane.b32.xlu0 %v1184, 96
    %v1188 = vpop.permute.xlu0 %1187
    %v1190 = vmul.f32 %v1185, %v1188
    %v1191 = vmul.f32 %v1171, %v1053
    %v1192 = vadd.f32 %v1190, %v1191
    %1194 = vrot.lane.b32.xlu0 %v1192, 96
    %v1195 = vpop.permute.xlu0 %1194
    %s1197 = scalar_lea.vmem %s8, 14
    %1198 = vst.msk [vmem:[%s1197] sm:$0x3] %vm224, %v1195
    %1199 = vst.msk [vmem:[#allocation2] sm:$0x3] %vm224, %v1126
    %1200 = vst.msk [vmem:[%s58] sm:$0x3] %vm224, %v1195
    %1201 = vst.msk [vmem:[#allocation3] sm:$0x3] %vm224, %v1126
    %s1202 = scalar_lea.vmem [#allocation3], 2
    %1203 = vst.msk [vmem:[%s1202] sm:$0x3] %vm224, %v1195
    // Predicated region
    $region38: #{gru_forward.1} parent=1 // pred_check
      _
    $region39: #{gru_forward.1} parent=1 // pred_check_branch
      %1205 = sbr.rel (0) target = $region41
    $region40: #{gru_forward.1} parent=1 // pred_region
      _
    $region41: #{gru_forward.1} parent=1 // pred_fallthru
      _
    // Predicated region
    $region42: #{gru_forward.1} parent=1 // pred_check
      _
    $region43: #{gru_forward.1} parent=1 // pred_check_branch
      %1207 = sbr.rel (0) target = $region45
    $region44: #{gru_forward.1} parent=1 // pred_region
      %1209 = vsyncadd [#allocation4], 0
      %s1210 = sshll.u32 [#allocation3], 4
      %s1211 = int_to_ptr.vmem [resolvable:$true] %s1210
      %s1212 = sshll.u32 %s9, 4
      %s1213 = int_to_ptr.hbm [resolvable:$true] %s1212
      %1218 = dma.vmem_to_hbm [thread:$0]  %s1211, 64, %s1213, [#allocation4], 32, 32, 2
    $region45: #{gru_forward.1} parent=1 // pred_fallthru
      _
    // Predicated region
    $region46: #{gru_forward.1} parent=1 // pred_check
      _
    $region47: #{gru_forward.1} parent=1 // pred_check_branch
      %1220 = sbr.rel (0) target = $region49
    $region48: #{gru_forward.1} parent=1 // pred_region
      _
    $region49: #{gru_forward.1} parent=1 // pred_fallthru
      _
    // Predicated region
    $region50: #{gru_forward.1} parent=1 // pred_check
      _
    $region51: #{gru_forward.1} parent=1 // pred_check_branch
      %1222 = sbr.rel (0) target = $region53
    $region52: #{gru_forward.1} parent=1 // pred_region
      %1224 = dma.done [#allocation4], 64
    $region53: #{gru_forward.1} parent=1 // pred_fallthru
      _
    %1225 = vsyncpa [#allocation4], 1

</llo_original>
